<compile_context>
chip_gen: v5e
topology: v5e:2x2
jax: 0.10.0
libtpu: 0.0.40
codegen_flags: <defaults>
</compile_context>

<pallas_src>
import jax
import jax.numpy as jnp
from jax.experimental import pallas as pl
from jax.experimental.pallas import tpu as pltpu

EPS = 1e-5  # PyTorch BatchNorm1d default eps


# ---------------------------------------------------------------------------
# Host-side (one-time) weight preprocessing: dense per-layer operators.
# ---------------------------------------------------------------------------

def conv1d_operator(w, l_in, stride=2, pad=1, input_layout='lc'):
    """Conv1d weight (C_out, C_in, K) -> dense (L_in*C_in, L_out*C_out).

    input_layout='lc': input flat index = l*C_in + c (channels-last flat).
    input_layout='cl': input flat index = c*L_in + l (native NCL flat), used
    for layer 0 so the wrapper needs no transpose.
    Output flat index is always l_out*C_out + c_out (channels-last flat)."""
    c_out, c_in, k = w.shape
    l_out = (l_in + 2 * pad - k) // stride + 1
    li = jnp.arange(l_in)
    lo = jnp.arange(l_out)
    kk = jnp.arange(k)
    # sel[k, l_in, l_out] = 1  iff  l_in == stride*l_out + k - pad  (zero pad implicit)
    sel = (li[None, :, None] ==
           (stride * lo[None, None, :] + kk[:, None, None] - pad)).astype(jnp.float32)
    if input_layout == 'lc':
        t = jnp.einsum('kio,yxk->ixoy', sel, w.astype(jnp.float32))  # (l_in, c_in, l_out, c_out)
    else:
        t = jnp.einsum('kio,yxk->xioy', sel, w.astype(jnp.float32))  # (c_in, l_in, l_out, c_out)
    return t.reshape(l_in * c_in, l_out * c_out), l_out, c_out


def convT1d_operator(w, l_in, stride=2, pad=1):
    """ConvTranspose1d weight (C_in, C_out, K) -> dense (L_in*C_in, L_out*C_out)."""
    c_in, c_out, k = w.shape
    l_out = (l_in - 1) * stride - 2 * pad + k
    li = jnp.arange(l_in)
    lo = jnp.arange(l_out)
    kk = jnp.arange(k)
    # sel[k, l_in, l_out] = 1  iff  l_out == stride*l_in + k - pad
    sel = (lo[None, None, :] ==
           (stride * li[None, :, None] + kk[:, None, None] - pad)).astype(jnp.float32)
    t = jnp.einsum('kio,xyk->ixoy', sel, w.astype(jnp.float32))      # (l_in, c_in, l_out, c_out)
    return t.reshape(l_in * c_in, l_out * c_out), l_out, c_out


def channel_reduce_matrix(l, c):
    """R (l*c, c) with R[i*c + j, j] = 1:  y_flat @ R sums over length per channel."""
    return jnp.tile(jnp.eye(c, dtype=jnp.float32), (l, 1))


def linear_operator(lin_w, l, c):
    """nn.Linear over the length dim -> dense (l*c, out*c); output flat = j*c + ch
    (so the host-side reshape directly yields the permute(0,2,1) result)."""
    t = jnp.einsum('jl,cd->lcjd', lin_w.astype(jnp.float32), jnp.eye(c, dtype=jnp.float32))
    return t.reshape(l * c, lin_w.shape[0] * c)


# ---------------------------------------------------------------------------
# Parameters (same shapes / semantics as the PyTorch module).
# ---------------------------------------------------------------------------

def _uniform(key, shape, fan_in):
    bound = 1.0 / float(fan_in) ** 0.5
    return jax.random.uniform(key, shape, jnp.float32, -bound, bound)


def init_params(key, in_ch, out_ch, seq_len):
    keys = iter(jax.random.split(key, 32))
    p = {'down_w': [], 'down_b': [], 'up_w': [], 'up_b': []}
    for i in range(4):
        cin = in_ch if i == 0 else out_ch
        fan = cin * 3
        p['down_w'].append(_uniform(next(keys), (out_ch, cin, 3), fan))
        p['down_b'].append(_uniform(next(keys), (out_ch,), fan))
    for i in range(3):
        fan = out_ch * 4
        p['up_w'].append(_uniform(next(keys), (out_ch, out_ch, 4), fan))
        p['up_b'].append(_uniform(next(keys), (out_ch,), fan))
    fan = out_ch * 4
    p['last_up_w'] = _uniform(next(keys), (out_ch, in_ch, 4), fan)
    p['last_up_b'] = _uniform(next(keys), (in_ch,), fan)
    p['bn_gamma'] = jnp.ones((out_ch,), jnp.float32)
    p['bn_beta'] = jnp.zeros((out_ch,), jnp.float32)
    p['last_bn_gamma'] = jnp.ones((in_ch,), jnp.float32)
    p['last_bn_beta'] = jnp.zeros((in_ch,), jnp.float32)
    # TODO(synk): the PyTorch module creates this Linear with fresh random weights
    # inside forward(); here it is initialized deterministically with the same shapes.
    p['lin_w'] = _uniform(next(keys), (out_ch, seq_len), seq_len)   # (out_features, in_features)
    p['lin_b'] = _uniform(next(keys), (out_ch,), seq_len)
    return p


# ---------------------------------------------------------------------------
# Build the fused-kernel plan: one packed lane-dense constant slab + static meta.
# ---------------------------------------------------------------------------

def build_plan(params, batch, in_ch, out_ch, seq_len):
    arrays = {}                                   # dedup key -> f32 array (2-D)

    def add(key, make):
        if key not in arrays:
            a = jnp.asarray(make(), jnp.float32)
            if a.ndim == 1:
                a = a[None, :]
            arrays[key] = a
        return key

    layer_defs = ([('conv', params['down_w'][i], 'shared') for i in range(4)] +
                  [('convT', params['up_w'][i], 'shared') for i in range(3)] +
                  [('convT', params['last_up_w'], 'last')])

    meta_keys = []
    l, c = seq_len, in_ch
    for li, (kind, w, bn) in enumerate(layer_defs):
        if kind == 'conv':
            layout = 'cl' if li == 0 else 'lc'    # layer 0 eats native NCL flat input
            t, l_out, c_out = conv1d_operator(w, l, input_layout=layout)
        else:
            t, l_out, c_out = convT1d_operator(w, l)
        gamma = params['bn_gamma'] if bn == 'shared' else params['last_bn_gamma']
        beta = params['bn_beta'] if bn == 'shared' else params['last_bn_beta']
        meta_keys.append(dict(
            t=add(('T', li), lambda t=t: t),
            r=add(('R', l_out, c_out),
                  lambda lo=l_out, co=c_out: channel_reduce_matrix(lo, co)),
            rt=add(('RT', l_out, c_out),
                   lambda lo=l_out, co=c_out: channel_reduce_matrix(lo, co).T),
            g=add(('gamma', bn), lambda g=gamma: g),
            b=add(('beta', bn), lambda b=beta: b),
            lc=l_out * c_out, c=c_out, inv_n=1.0 / float(batch * l_out),
            save=(li < 4),                                 # down features kept for skips
            skip=(6 - li) if 4 <= li <= 6 else None,       # downsampled_features[-(i+2)]
        ))
        l, c = l_out, c_out

    lin_key = add(('lin_m',), lambda: linear_operator(params['lin_w'], l, c))
    linb_key = add(('lin_b',), lambda: jnp.repeat(params['lin_b'].astype(jnp.float32), c))

    # Pack everything into ONE lane-dense slab; every block starts at an
    # 8-aligned (sublane-aligned) row offset, columns are zero-padded to W.
    max_cols = max(int(a.shape[1]) for a in arrays.values())
    w_slab = -(-max_cols // 128) * 128
    offsets, blocks, off = {}, [], 0
    for k, a in arrays.items():
        rows, cols = int(a.shape[0]), int(a.shape[1])
        rows_p = -(-rows // 8) * 8
        blk = jnp.zeros((rows_p, w_slab), jnp.float32).at[:rows, :cols].set(a)
        blocks.append(blk)
        offsets[k] = (off, rows, cols)            # static (row0, nrows, ncols)
        off += rows_p
    slab = jnp.concatenate(blocks, axis=0)

    def resolve(m):
        out = dict(m)
        for f in ('t', 'r', 'rt', 'g', 'b'):
            out[f] = offsets[m[f]]
        return out

    meta = tuple(resolve(m) for m in meta_keys)
    return dict(slab=slab, meta=meta,
                lin=offsets[lin_key], lin_b=offsets[linb_key],
                batch=batch, out_ch=out_ch, feat_ch=c, out_dim=out_ch * c,
                in_flat=in_ch * seq_len)


# ---------------------------------------------------------------------------
# The fused Pallas kernel: whole pyramid, no grid, everything VMEM resident.
# ---------------------------------------------------------------------------

def _make_fpn_kernel(meta, lin, lin_b):
    def kernel(x_ref, slab_ref, o_ref):
        def load(entry):
            r0, rows, cols = entry               # static -> ref view slice, cheap load
            return slab_ref[r0:r0 + rows, :cols]

        h = x_ref[...]                           # (B, C_in*L0): native NCL flat
        feats = []
        for m in meta:
            lc, cc = m['lc'], m['c']

            # Conv / ConvTranspose as one dense matmul.  (Conv bias omitted: a
            # per-channel additive constant is exactly cancelled by the
            # training-mode BatchNorm mean subtraction below.)
            y = jnp.dot(h, load(m['t']), preferred_element_type=jnp.float32)    # (B, L*C)

            # BatchNorm1d batch statistics: one stacked matmul for [sum y; sum y^2].
            s1 = jnp.sum(y, axis=0, keepdims=True)                               # (1, L*C)
            s2 = jnp.sum(y * y, axis=0, keepdims=True)                           # (1, L*C)
            row = jax.lax.broadcasted_iota(jnp.int32, (2, lc), 0)
            sums = jnp.where(row == 0, s1, s2)                                   # (2, L*C)
            stats = jnp.dot(sums, load(m['r']),
                            preferred_element_type=jnp.float32) * m['inv_n']     # (2, C)
            mean = stats[0:1]
            var = jnp.maximum(stats[1:2] - mean * mean, 0.0)                     # E[y^2]-mean^2
            a = load(m['g']) * jax.lax.rsqrt(var + EPS)                          # (1, C)
            b = load(m['b']) - mean * a                                          # (1, C)

            # Broadcast the per-channel affine back to lanes with ONE stacked dot.
            row_c = jax.lax.broadcasted_iota(jnp.int32, (2, cc), 0)
            ab = jnp.where(row_c == 0, a, b)                                     # (2, C)
            ab_f = jnp.dot(ab, load(m['rt']),
                           preferred_element_type=jnp.float32)                   # (2, L*C)

            h = jnp.maximum(y * ab_f[0:1] + ab_f[1:2], 0.0)                      # BN affine + ReLU
            if m['save']:
                feats.append(h)                                                  # VMEM-resident skip
            if m['skip'] is not None:
                h = h + feats[m['skip']]                                         # post-ReLU residual

        # Final nn.Linear over the length dim; permute(0,2,1) folded into the operator.
        # TODO(synk): output last dim is 32 (<128) -> masked store; pad to 128 if scaled.
        o_ref[...] = (jnp.dot(h, load(lin), preferred_element_type=jnp.float32)
                      + load(lin_b))
    return kernel


def make_fpn_forward(plan, in_ch, seq_len):
    batch, out_dim = plan['batch'], plan['out_dim']
    kernel = _make_fpn_kernel(plan['meta'], plan['lin'], plan['lin_b'])
    vmem = pl.BlockSpec(memory_space=pltpu.MemorySpace.VMEM)

    call = pl.pallas_call(                       # no grid: single shot, no pipeline overhead
        kernel,
        out_shape=jax.ShapeDtypeStruct((batch, out_dim), jnp.float32),
        in_specs=[vmem, vmem],
        out_specs=vmem,
    )

    def forward(x, slab):
        x_flat = x.reshape(batch, in_ch * seq_len)   # native NCL flat; no transpose needed
        out_flat = call(x_flat, slab)
        return out_flat.reshape(batch, plan['out_ch'], plan['feat_ch'])

    return jax.jit(forward)


# ---------------------------------------------------------------------------
# Pure-JAX reference (independent lax.conv formulation, biases included).
# ---------------------------------------------------------------------------

def _ref_bn_relu(y, gamma, beta):
    mean = jnp.mean(y, axis=(0, 2), keepdims=True)
    var = jnp.mean(jnp.square(y - mean), axis=(0, 2), keepdims=True)
    yhat = (y - mean) * jax.lax.rsqrt(var + EPS)
    return jnp.maximum(yhat * gamma[None, :, None] + beta[None, :, None], 0.0)


def _ref_conv(x, w, b):
    y = jax.lax.conv_general_dilated(x, w, window_strides=(2,), padding=[(1, 1)],
                                     dimension_numbers=('NCH', 'OIH', 'NCH'))
    return y + b[None, :, None]


def _ref_convT(x, w, b):
    wf = jnp.flip(w, axis=-1).transpose(1, 0, 2)   # (C_out, C_in, K), flipped taps
    y = jax.lax.conv_general_dilated(x, wf, window_strides=(1,), padding=[(2, 2)],
                                     lhs_dilation=(2,),
                                     dimension_numbers=('NCH', 'OIH', 'NCH'))
    return y + b[None, :, None]


def reference_forward(x, params):
    g, b = params['bn_gamma'], params['bn_beta']
    feats = []
    out = x
    for i in range(4):
        out = _ref_bn_relu(_ref_conv(out, params['down_w'][i], params['down_b'][i]), g, b)
        feats.append(out)
    for i in range(3):
        out = _ref_bn_relu(_ref_convT(out, params['up_w'][i], params['up_b'][i]), g, b)
        out = out + feats[-(i + 2)]
    out = _ref_bn_relu(_ref_convT(out, params['last_up_w'], params['last_up_b']),
                       params['last_bn_gamma'], params['last_bn_beta'])
    y = jnp.einsum('bcl,jl->bcj', out, params['lin_w']) + params['lin_b'][None, None, :]
    return jnp.transpose(y, (0, 2, 1))


# ----------------------------------- main ------------------------------------

if __name__ == "__main__":
    B, IN_CH, OUT_CH, L = 2, 4, 8, 16

    key = jax.random.PRNGKey(0)
    kx, kp = jax.random.split(key)
    x = jax.random.normal(kx, (B, IN_CH, L), jnp.float32)
    params = init_params(kp, IN_CH, OUT_CH, L)

    plan = build_plan(params, B, IN_CH, OUT_CH, L)
    fpn = make_fpn_forward(plan, IN_CH, L)

    out = jax.block_until_ready(fpn(x, plan['slab']))

    assert out.shape == (B, OUT_CH, IN_CH), out.shape
    assert out.dtype == jnp.float32
    assert bool(jnp.isfinite(out).all())

    ref = jax.block_until_ready(reference_forward(x, params))
    max_err = float(jnp.max(jnp.abs(out - ref)))
    assert max_err < 5e-3, f"mismatch vs pure-JAX reference: {max_err}"

    print("KERNEL_OK")
</pallas_src>

<mosaic_0001>
module attributes {stable_mosaic.version = 11 : i64} {
  func.func @kernel(%arg0: memref<2x64xf32, #tpu.memory_space<vmem>>, %arg1: memref<624x128xf32, #tpu.memory_space<vmem>>, %arg2: memref<2x32xf32, #tpu.memory_space<vmem>>) attributes {dimension_semantics = [], scalar_prefetch = 0 : i64, scratch_operands = 0 : i64, tpu.core_type = #tpu.core_type<tc>} {
    %c0 = arith.constant 0 : index
    %c0_0 = arith.constant 0 : index
    %0 = vector.load %arg0[%c0, %c0_0] : memref<2x64xf32, #tpu.memory_space<vmem>>, vector<2x64xf32>
    %c0_1 = arith.constant 0 : index
    %c0_2 = arith.constant 0 : index
    %1 = vector.load %arg1[%c0_1, %c0_2] : memref<624x128xf32, #tpu.memory_space<vmem>>, vector<64x64xf32>
    %cst = arith.constant dense<0.000000e+00> : vector<2x64xf32>
    %2 = tpu.matmul %0, %1, %cst {dimension_numbers = #tpu.dot_dimension_numbers<[1], [0], [0], [1], [0, 0, 1, 1], [], []>} : vector<2x64xf32>, vector<64x64xf32>, vector<2x64xf32> -> vector<2x64xf32>
    %cst_3 = arith.constant dense<0.000000e+00> : vector<64xf32>
    %3 = vector.multi_reduction <add>, %2, %cst_3 [0] : vector<2x64xf32> to vector<64xf32>
    %4 = vector.shape_cast %3 : vector<64xf32> to vector<1x64xf32>
    %5 = arith.mulf %2, %2 : vector<2x64xf32>
    %cst_4 = arith.constant dense<0.000000e+00> : vector<64xf32>
    %6 = vector.multi_reduction <add>, %5, %cst_4 [0] : vector<2x64xf32> to vector<64xf32>
    %7 = vector.shape_cast %6 : vector<64xf32> to vector<1x64xf32>
    %8 = tpu.iota {dimensions = array<i32: 0>} : vector<2x64xi32>
    %c0_i32 = arith.constant 0 : i32
    %9 = vector.broadcast %c0_i32 : i32 to vector<2x64xi32>
    %10 = arith.cmpi eq, %8, %9 : vector<2x64xi32>
    %11 = vector.shape_cast %4 : vector<1x64xf32> to vector<1x64xf32>
    %12 = vector.broadcast %11 : vector<1x64xf32> to vector<2x64xf32>
    %13 = vector.shape_cast %7 : vector<1x64xf32> to vector<1x64xf32>
    %14 = vector.broadcast %13 : vector<1x64xf32> to vector<2x64xf32>
    %15 = arith.select %10, %12, %14 : vector<2x64xi1>, vector<2x64xf32>
    %c64 = arith.constant 64 : index
    %c0_5 = arith.constant 0 : index
    %16 = vector.load %arg1[%c64, %c0_5] : memref<624x128xf32, #tpu.memory_space<vmem>>, vector<64x8xf32>
    %cst_6 = arith.constant dense<0.000000e+00> : vector<2x8xf32>
    %17 = tpu.matmul %15, %16, %cst_6 {dimension_numbers = #tpu.dot_dimension_numbers<[1], [0], [0], [1], [0, 0, 1, 1], [], []>} : vector<2x64xf32>, vector<64x8xf32>, vector<2x8xf32> -> vector<2x8xf32>
    %cst_7 = arith.constant 6.250000e-02 : f32
    %18 = vector.broadcast %cst_7 : f32 to vector<2x8xf32>
    %19 = arith.mulf %17, %18 : vector<2x8xf32>
    %20 = vector.extract_strided_slice %19 {offsets = [0, 0], sizes = [1, 8], strides = [1, 1]} : vector<2x8xf32> to vector<1x8xf32>
    %21 = vector.extract_strided_slice %19 {offsets = [1, 0], sizes = [1, 8], strides = [1, 1]} : vector<2x8xf32> to vector<1x8xf32>
    %22 = arith.mulf %20, %20 : vector<1x8xf32>
    %23 = arith.subf %21, %22 : vector<1x8xf32>
    %cst_8 = arith.constant 0.000000e+00 : f32
    %24 = vector.broadcast %cst_8 : f32 to vector<1x8xf32>
    %25 = arith.maximumf %23, %24 : vector<1x8xf32>
    %c136 = arith.constant 136 : index
    %c0_9 = arith.constant 0 : index
    %26 = vector.load %arg1[%c136, %c0_9] : memref<624x128xf32, #tpu.memory_space<vmem>>, vector<1x8xf32>
    %cst_10 = arith.constant 9.99999974E-6 : f32
    %27 = vector.broadcast %cst_10 : f32 to vector<1x8xf32>
    %28 = arith.addf %25, %27 : vector<1x8xf32>
    %29 = math.rsqrt %28 : vector<1x8xf32>
    %30 = arith.mulf %26, %29 : vector<1x8xf32>
    %c144 = arith.constant 144 : index
    %c0_11 = arith.constant 0 : index
    %31 = vector.load %arg1[%c144, %c0_11] : memref<624x128xf32, #tpu.memory_space<vmem>>, vector<1x8xf32>
    %32 = arith.mulf %20, %30 : vector<1x8xf32>
    %33 = arith.subf %31, %32 : vector<1x8xf32>
    %34 = tpu.iota {dimensions = array<i32: 0>} : vector<2x8xi32>
    %c0_i32_12 = arith.constant 0 : i32
    %35 = vector.broadcast %c0_i32_12 : i32 to vector<2x8xi32>
    %36 = arith.cmpi eq, %34, %35 : vector<2x8xi32>
    %37 = vector.shape_cast %30 : vector<1x8xf32> to vector<1x8xf32>
    %38 = vector.broadcast %37 : vector<1x8xf32> to vector<2x8xf32>
    %39 = vector.shape_cast %33 : vector<1x8xf32> to vector<1x8xf32>
    %40 = vector.broadcast %39 : vector<1x8xf32> to vector<2x8xf32>
    %41 = arith.select %36, %38, %40 : vector<2x8xi1>, vector<2x8xf32>
    %c128 = arith.constant 128 : index
    %c0_13 = arith.constant 0 : index
    %42 = vector.load %arg1[%c128, %c0_13] : memref<624x128xf32, #tpu.memory_space<vmem>>, vector<8x64xf32>
    %cst_14 = arith.constant dense<0.000000e+00> : vector<2x64xf32>
    %43 = tpu.matmul %41, %42, %cst_14 {dimension_numbers = #tpu.dot_dimension_numbers<[1], [0], [0], [1], [0, 0, 1, 1], [], []>} : vector<2x8xf32>, vector<8x64xf32>, vector<2x64xf32> -> vector<2x64xf32>
    %44 = vector.extract_strided_slice %43 {offsets = [0, 0], sizes = [1, 64], strides = [1, 1]} : vector<2x64xf32> to vector<1x64xf32>
    %45 = vector.broadcast %44 : vector<1x64xf32> to vector<2x64xf32>
    %46 = arith.mulf %2, %45 : vector<2x64xf32>
    %47 = vector.extract_strided_slice %43 {offsets = [1, 0], sizes = [1, 64], strides = [1, 1]} : vector<2x64xf32> to vector<1x64xf32>
    %48 = vector.broadcast %47 : vector<1x64xf32> to vector<2x64xf32>
    %49 = arith.addf %46, %48 : vector<2x64xf32>
    %cst_15 = arith.constant 0.000000e+00 : f32
    %50 = vector.broadcast %cst_15 : f32 to vector<2x64xf32>
    %51 = arith.maximumf %49, %50 : vector<2x64xf32>
    %c152 = arith.constant 152 : index
    %c0_16 = arith.constant 0 : index
    %52 = vector.load %arg1[%c152, %c0_16] : memref<624x128xf32, #tpu.memory_space<vmem>>, vector<64x32xf32>
    %cst_17 = arith.constant dense<0.000000e+00> : vector<2x32xf32>
    %53 = tpu.matmul %51, %52, %cst_17 {dimension_numbers = #tpu.dot_dimension_numbers<[1], [0], [0], [1], [0, 0, 1, 1], [], []>} : vector<2x64xf32>, vector<64x32xf32>, vector<2x32xf32> -> vector<2x32xf32>
    %cst_18 = arith.constant dense<0.000000e+00> : vector<32xf32>
    %54 = vector.multi_reduction <add>, %53, %cst_18 [0] : vector<2x32xf32> to vector<32xf32>
    %55 = vector.shape_cast %54 : vector<32xf32> to vector<1x32xf32>
    %56 = arith.mulf %53, %53 : vector<2x32xf32>
    %cst_19 = arith.constant dense<0.000000e+00> : vector<32xf32>
    %57 = vector.multi_reduction <add>, %56, %cst_19 [0] : vector<2x32xf32> to vector<32xf32>
    %58 = vector.shape_cast %57 : vector<32xf32> to vector<1x32xf32>
    %59 = tpu.iota {dimensions = array<i32: 0>} : vector<2x32xi32>
    %c0_i32_20 = arith.constant 0 : i32
    %60 = vector.broadcast %c0_i32_20 : i32 to vector<2x32xi32>
    %61 = arith.cmpi eq, %59, %60 : vector<2x32xi32>
    %62 = vector.shape_cast %55 : vector<1x32xf32> to vector<1x32xf32>
    %63 = vector.broadcast %62 : vector<1x32xf32> to vector<2x32xf32>
    %64 = vector.shape_cast %58 : vector<1x32xf32> to vector<1x32xf32>
    %65 = vector.broadcast %64 : vector<1x32xf32> to vector<2x32xf32>
    %66 = arith.select %61, %63, %65 : vector<2x32xi1>, vector<2x32xf32>
    %c216 = arith.constant 216 : index
    %c0_21 = arith.constant 0 : index
    %67 = vector.load %arg1[%c216, %c0_21] : memref<624x128xf32, #tpu.memory_space<vmem>>, vector<32x8xf32>
    %cst_22 = arith.constant dense<0.000000e+00> : vector<2x8xf32>
    %68 = tpu.matmul %66, %67, %cst_22 {dimension_numbers = #tpu.dot_dimension_numbers<[1], [0], [0], [1], [0, 0, 1, 1], [], []>} : vector<2x32xf32>, vector<32x8xf32>, vector<2x8xf32> -> vector<2x8xf32>
    %cst_23 = arith.constant 1.250000e-01 : f32
    %69 = vector.broadcast %cst_23 : f32 to vector<2x8xf32>
    %70 = arith.mulf %68, %69 : vector<2x8xf32>
    %71 = vector.extract_strided_slice %70 {offsets = [0, 0], sizes = [1, 8], strides = [1, 1]} : vector<2x8xf32> to vector<1x8xf32>
    %72 = vector.extract_strided_slice %70 {offsets = [1, 0], sizes = [1, 8], strides = [1, 1]} : vector<2x8xf32> to vector<1x8xf32>
    %73 = arith.mulf %71, %71 : vector<1x8xf32>
    %74 = arith.subf %72, %73 : vector<1x8xf32>
    %cst_24 = arith.constant 0.000000e+00 : f32
    %75 = vector.broadcast %cst_24 : f32 to vector<1x8xf32>
    %76 = arith.maximumf %74, %75 : vector<1x8xf32>
    %c136_25 = arith.constant 136 : index
    %c0_26 = arith.constant 0 : index
    %77 = vector.load %arg1[%c136_25, %c0_26] : memref<624x128xf32, #tpu.memory_space<vmem>>, vector<1x8xf32>
    %cst_27 = arith.constant 9.99999974E-6 : f32
    %78 = vector.broadcast %cst_27 : f32 to vector<1x8xf32>
    %79 = arith.addf %76, %78 : vector<1x8xf32>
    %80 = math.rsqrt %79 : vector<1x8xf32>
    %81 = arith.mulf %77, %80 : vector<1x8xf32>
    %c144_28 = arith.constant 144 : index
    %c0_29 = arith.constant 0 : index
    %82 = vector.load %arg1[%c144_28, %c0_29] : memref<624x128xf32, #tpu.memory_space<vmem>>, vector<1x8xf32>
    %83 = arith.mulf %71, %81 : vector<1x8xf32>
    %84 = arith.subf %82, %83 : vector<1x8xf32>
    %85 = tpu.iota {dimensions = array<i32: 0>} : vector<2x8xi32>
    %c0_i32_30 = arith.constant 0 : i32
    %86 = vector.broadcast %c0_i32_30 : i32 to vector<2x8xi32>
    %87 = arith.cmpi eq, %85, %86 : vector<2x8xi32>
    %88 = vector.shape_cast %81 : vector<1x8xf32> to vector<1x8xf32>
    %89 = vector.broadcast %88 : vector<1x8xf32> to vector<2x8xf32>
    %90 = vector.shape_cast %84 : vector<1x8xf32> to vector<1x8xf32>
    %91 = vector.broadcast %90 : vector<1x8xf32> to vector<2x8xf32>
    %92 = arith.select %87, %89, %91 : vector<2x8xi1>, vector<2x8xf32>
    %c248 = arith.constant 248 : index
    %c0_31 = arith.constant 0 : index
    %93 = vector.load %arg1[%c248, %c0_31] : memref<624x128xf32, #tpu.memory_space<vmem>>, vector<8x32xf32>
    %cst_32 = arith.constant dense<0.000000e+00> : vector<2x32xf32>
    %94 = tpu.matmul %92, %93, %cst_32 {dimension_numbers = #tpu.dot_dimension_numbers<[1], [0], [0], [1], [0, 0, 1, 1], [], []>} : vector<2x8xf32>, vector<8x32xf32>, vector<2x32xf32> -> vector<2x32xf32>
    %95 = vector.extract_strided_slice %94 {offsets = [0, 0], sizes = [1, 32], strides = [1, 1]} : vector<2x32xf32> to vector<1x32xf32>
    %96 = vector.broadcast %95 : vector<1x32xf32> to vector<2x32xf32>
    %97 = arith.mulf %53, %96 : vector<2x32xf32>
    %98 = vector.extract_strided_slice %94 {offsets = [1, 0], sizes = [1, 32], strides = [1, 1]} : vector<2x32xf32> to vector<1x32xf32>
    %99 = vector.broadcast %98 : vector<1x32xf32> to vector<2x32xf32>
    %100 = arith.addf %97, %99 : vector<2x32xf32>
    %cst_33 = arith.constant 0.000000e+00 : f32
    %101 = vector.broadcast %cst_33 : f32 to vector<2x32xf32>
    %102 = arith.maximumf %100, %101 : vector<2x32xf32>
    %c256 = arith.constant 256 : index
    %c0_34 = arith.constant 0 : index
    %103 = vector.load %arg1[%c256, %c0_34] : memref<624x128xf32, #tpu.memory_space<vmem>>, vector<32x16xf32>
    %cst_35 = arith.constant dense<0.000000e+00> : vector<2x16xf32>
    %104 = tpu.matmul %102, %103, %cst_35 {dimension_numbers = #tpu.dot_dimension_numbers<[1], [0], [0], [1], [0, 0, 1, 1], [], []>} : vector<2x32xf32>, vector<32x16xf32>, vector<2x16xf32> -> vector<2x16xf32>
    %cst_36 = arith.constant dense<0.000000e+00> : vector<16xf32>
    %105 = vector.multi_reduction <add>, %104, %cst_36 [0] : vector<2x16xf32> to vector<16xf32>
    %106 = vector.shape_cast %105 : vector<16xf32> to vector<1x16xf32>
    %107 = arith.mulf %104, %104 : vector<2x16xf32>
    %cst_37 = arith.constant dense<0.000000e+00> : vector<16xf32>
    %108 = vector.multi_reduction <add>, %107, %cst_37 [0] : vector<2x16xf32> to vector<16xf32>
    %109 = vector.shape_cast %108 : vector<16xf32> to vector<1x16xf32>
    %110 = tpu.iota {dimensions = array<i32: 0>} : vector<2x16xi32>
    %c0_i32_38 = arith.constant 0 : i32
    %111 = vector.broadcast %c0_i32_38 : i32 to vector<2x16xi32>
    %112 = arith.cmpi eq, %110, %111 : vector<2x16xi32>
    %113 = vector.shape_cast %106 : vector<1x16xf32> to vector<1x16xf32>
    %114 = vector.broadcast %113 : vector<1x16xf32> to vector<2x16xf32>
    %115 = vector.shape_cast %109 : vector<1x16xf32> to vector<1x16xf32>
    %116 = vector.broadcast %115 : vector<1x16xf32> to vector<2x16xf32>
    %117 = arith.select %112, %114, %116 : vector<2x16xi1>, vector<2x16xf32>
    %c288 = arith.constant 288 : index
    %c0_39 = arith.constant 0 : index
    %118 = vector.load %arg1[%c288, %c0_39] : memref<624x128xf32, #tpu.memory_space<vmem>>, vector<16x8xf32>
    %cst_40 = arith.constant dense<0.000000e+00> : vector<2x8xf32>
    %119 = tpu.matmul %117, %118, %cst_40 {dimension_numbers = #tpu.dot_dimension_numbers<[1], [0], [0], [1], [0, 0, 1, 1], [], []>} : vector<2x16xf32>, vector<16x8xf32>, vector<2x8xf32> -> vector<2x8xf32>
    %cst_41 = arith.constant 2.500000e-01 : f32
    %120 = vector.broadcast %cst_41 : f32 to vector<2x8xf32>
    %121 = arith.mulf %119, %120 : vector<2x8xf32>
    %122 = vector.extract_strided_slice %121 {offsets = [0, 0], sizes = [1, 8], strides = [1, 1]} : vector<2x8xf32> to vector<1x8xf32>
    %123 = vector.extract_strided_slice %121 {offsets = [1, 0], sizes = [1, 8], strides = [1, 1]} : vector<2x8xf32> to vector<1x8xf32>
    %124 = arith.mulf %122, %122 : vector<1x8xf32>
    %125 = arith.subf %123, %124 : vector<1x8xf32>
    %cst_42 = arith.constant 0.000000e+00 : f32
    %126 = vector.broadcast %cst_42 : f32 to vector<1x8xf32>
    %127 = arith.maximumf %125, %126 : vector<1x8xf32>
    %c136_43 = arith.constant 136 : index
    %c0_44 = arith.constant 0 : index
    %128 = vector.load %arg1[%c136_43, %c0_44] : memref<624x128xf32, #tpu.memory_space<vmem>>, vector<1x8xf32>
    %cst_45 = arith.constant 9.99999974E-6 : f32
    %129 = vector.broadcast %cst_45 : f32 to vector<1x8xf32>
    %130 = arith.addf %127, %129 : vector<1x8xf32>
    %131 = math.rsqrt %130 : vector<1x8xf32>
    %132 = arith.mulf %128, %131 : vector<1x8xf32>
    %c144_46 = arith.constant 144 : index
    %c0_47 = arith.constant 0 : index
    %133 = vector.load %arg1[%c144_46, %c0_47] : memref<624x128xf32, #tpu.memory_space<vmem>>, vector<1x8xf32>
    %134 = arith.mulf %122, %132 : vector<1x8xf32>
    %135 = arith.subf %133, %134 : vector<1x8xf32>
    %136 = tpu.iota {dimensions = array<i32: 0>} : vector<2x8xi32>
    %c0_i32_48 = arith.constant 0 : i32
    %137 = vector.broadcast %c0_i32_48 : i32 to vector<2x8xi32>
    %138 = arith.cmpi eq, %136, %137 : vector<2x8xi32>
    %139 = vector.shape_cast %132 : vector<1x8xf32> to vector<1x8xf32>
    %140 = vector.broadcast %139 : vector<1x8xf32> to vector<2x8xf32>
    %141 = vector.shape_cast %135 : vector<1x8xf32> to vector<1x8xf32>
    %142 = vector.broadcast %141 : vector<1x8xf32> to vector<2x8xf32>
    %143 = arith.select %138, %140, %142 : vector<2x8xi1>, vector<2x8xf32>
    %c304 = arith.constant 304 : index
    %c0_49 = arith.constant 0 : index
    %144 = vector.load %arg1[%c304, %c0_49] : memref<624x128xf32, #tpu.memory_space<vmem>>, vector<8x16xf32>
    %cst_50 = arith.constant dense<0.000000e+00> : vector<2x16xf32>
    %145 = tpu.matmul %143, %144, %cst_50 {dimension_numbers = #tpu.dot_dimension_numbers<[1], [0], [0], [1], [0, 0, 1, 1], [], []>} : vector<2x8xf32>, vector<8x16xf32>, vector<2x16xf32> -> vector<2x16xf32>
    %146 = vector.extract_strided_slice %145 {offsets = [0, 0], sizes = [1, 16], strides = [1, 1]} : vector<2x16xf32> to vector<1x16xf32>
    %147 = vector.broadcast %146 : vector<1x16xf32> to vector<2x16xf32>
    %148 = arith.mulf %104, %147 : vector<2x16xf32>
    %149 = vector.extract_strided_slice %145 {offsets = [1, 0], sizes = [1, 16], strides = [1, 1]} : vector<2x16xf32> to vector<1x16xf32>
    %150 = vector.broadcast %149 : vector<1x16xf32> to vector<2x16xf32>
    %151 = arith.addf %148, %150 : vector<2x16xf32>
    %cst_51 = arith.constant 0.000000e+00 : f32
    %152 = vector.broadcast %cst_51 : f32 to vector<2x16xf32>
    %153 = arith.maximumf %151, %152 : vector<2x16xf32>
    %c312 = arith.constant 312 : index
    %c0_52 = arith.constant 0 : index
    %154 = vector.load %arg1[%c312, %c0_52] : memref<624x128xf32, #tpu.memory_space<vmem>>, vector<16x8xf32>
    %cst_53 = arith.constant dense<0.000000e+00> : vector<2x8xf32>
    %155 = tpu.matmul %153, %154, %cst_53 {dimension_numbers = #tpu.dot_dimension_numbers<[1], [0], [0], [1], [0, 0, 1, 1], [], []>} : vector<2x16xf32>, vector<16x8xf32>, vector<2x8xf32> -> vector<2x8xf32>
    %cst_54 = arith.constant dense<0.000000e+00> : vector<8xf32>
    %156 = vector.multi_reduction <add>, %155, %cst_54 [0] : vector<2x8xf32> to vector<8xf32>
    %157 = vector.shape_cast %156 : vector<8xf32> to vector<1x8xf32>
    %158 = arith.mulf %155, %155 : vector<2x8xf32>
    %cst_55 = arith.constant dense<0.000000e+00> : vector<8xf32>
    %159 = vector.multi_reduction <add>, %158, %cst_55 [0] : vector<2x8xf32> to vector<8xf32>
    %160 = vector.shape_cast %159 : vector<8xf32> to vector<1x8xf32>
    %161 = tpu.iota {dimensions = array<i32: 0>} : vector<2x8xi32>
    %c0_i32_56 = arith.constant 0 : i32
    %162 = vector.broadcast %c0_i32_56 : i32 to vector<2x8xi32>
    %163 = arith.cmpi eq, %161, %162 : vector<2x8xi32>
    %164 = vector.shape_cast %157 : vector<1x8xf32> to vector<1x8xf32>
    %165 = vector.broadcast %164 : vector<1x8xf32> to vector<2x8xf32>
    %166 = vector.shape_cast %160 : vector<1x8xf32> to vector<1x8xf32>
    %167 = vector.broadcast %166 : vector<1x8xf32> to vector<2x8xf32>
    %168 = arith.select %163, %165, %167 : vector<2x8xi1>, vector<2x8xf32>
    %c328 = arith.constant 328 : index
    %c0_57 = arith.constant 0 : index
    %169 = vector.load %arg1[%c328, %c0_57] : memref<624x128xf32, #tpu.memory_space<vmem>>, vector<8x8xf32>
    %cst_58 = arith.constant dense<0.000000e+00> : vector<2x8xf32>
    %170 = tpu.matmul %168, %169, %cst_58 {dimension_numbers = #tpu.dot_dimension_numbers<[1], [0], [0], [1], [0, 0, 1, 1], [], []>} : vector<2x8xf32>, vector<8x8xf32>, vector<2x8xf32> -> vector<2x8xf32>
    %cst_59 = arith.constant 5.000000e-01 : f32
    %171 = vector.broadcast %cst_59 : f32 to vector<2x8xf32>
    %172 = arith.mulf %170, %171 : vector<2x8xf32>
    %173 = vector.extract_strided_slice %172 {offsets = [0, 0], sizes = [1, 8], strides = [1, 1]} : vector<2x8xf32> to vector<1x8xf32>
    %174 = vector.extract_strided_slice %172 {offsets = [1, 0], sizes = [1, 8], strides = [1, 1]} : vector<2x8xf32> to vector<1x8xf32>
    %175 = arith.mulf %173, %173 : vector<1x8xf32>
    %176 = arith.subf %174, %175 : vector<1x8xf32>
    %cst_60 = arith.constant 0.000000e+00 : f32
    %177 = vector.broadcast %cst_60 : f32 to vector<1x8xf32>
    %178 = arith.maximumf %176, %177 : vector<1x8xf32>
    %c136_61 = arith.constant 136 : index
    %c0_62 = arith.constant 0 : index
    %179 = vector.load %arg1[%c136_61, %c0_62] : memref<624x128xf32, #tpu.memory_space<vmem>>, vector<1x8xf32>
    %cst_63 = arith.constant 9.99999974E-6 : f32
    %180 = vector.broadcast %cst_63 : f32 to vector<1x8xf32>
    %181 = arith.addf %178, %180 : vector<1x8xf32>
    %182 = math.rsqrt %181 : vector<1x8xf32>
    %183 = arith.mulf %179, %182 : vector<1x8xf32>
    %c144_64 = arith.constant 144 : index
    %c0_65 = arith.constant 0 : index
    %184 = vector.load %arg1[%c144_64, %c0_65] : memref<624x128xf32, #tpu.memory_space<vmem>>, vector<1x8xf32>
    %185 = arith.mulf %173, %183 : vector<1x8xf32>
    %186 = arith.subf %184, %185 : vector<1x8xf32>
    %187 = tpu.iota {dimensions = array<i32: 0>} : vector<2x8xi32>
    %c0_i32_66 = arith.constant 0 : i32
    %188 = vector.broadcast %c0_i32_66 : i32 to vector<2x8xi32>
    %189 = arith.cmpi eq, %187, %188 : vector<2x8xi32>
    %190 = vector.shape_cast %183 : vector<1x8xf32> to vector<1x8xf32>
    %191 = vector.broadcast %190 : vector<1x8xf32> to vector<2x8xf32>
    %192 = vector.shape_cast %186 : vector<1x8xf32> to vector<1x8xf32>
    %193 = vector.broadcast %192 : vector<1x8xf32> to vector<2x8xf32>
    %194 = arith.select %189, %191, %193 : vector<2x8xi1>, vector<2x8xf32>
    %c336 = arith.constant 336 : index
    %c0_67 = arith.constant 0 : index
    %195 = vector.load %arg1[%c336, %c0_67] : memref<624x128xf32, #tpu.memory_space<vmem>>, vector<8x8xf32>
    %cst_68 = arith.constant dense<0.000000e+00> : vector<2x8xf32>
    %196 = tpu.matmul %194, %195, %cst_68 {dimension_numbers = #tpu.dot_dimension_numbers<[1], [0], [0], [1], [0, 0, 1, 1], [], []>} : vector<2x8xf32>, vector<8x8xf32>, vector<2x8xf32> -> vector<2x8xf32>
    %197 = vector.extract_strided_slice %196 {offsets = [0, 0], sizes = [1, 8], strides = [1, 1]} : vector<2x8xf32> to vector<1x8xf32>
    %198 = vector.broadcast %197 : vector<1x8xf32> to vector<2x8xf32>
    %199 = arith.mulf %155, %198 : vector<2x8xf32>
    %200 = vector.extract_strided_slice %196 {offsets = [1, 0], sizes = [1, 8], strides = [1, 1]} : vector<2x8xf32> to vector<1x8xf32>
    %201 = vector.broadcast %200 : vector<1x8xf32> to vector<2x8xf32>
    %202 = arith.addf %199, %201 : vector<2x8xf32>
    %cst_69 = arith.constant 0.000000e+00 : f32
    %203 = vector.broadcast %cst_69 : f32 to vector<2x8xf32>
    %204 = arith.maximumf %202, %203 : vector<2x8xf32>
    %c344 = arith.constant 344 : index
    %c0_70 = arith.constant 0 : index
    %205 = vector.load %arg1[%c344, %c0_70] : memref<624x128xf32, #tpu.memory_space<vmem>>, vector<8x16xf32>
    %cst_71 = arith.constant dense<0.000000e+00> : vector<2x16xf32>
    %206 = tpu.matmul %204, %205, %cst_71 {dimension_numbers = #tpu.dot_dimension_numbers<[1], [0], [0], [1], [0, 0, 1, 1], [], []>} : vector<2x8xf32>, vector<8x16xf32>, vector<2x16xf32> -> vector<2x16xf32>
    %cst_72 = arith.constant dense<0.000000e+00> : vector<16xf32>
    %207 = vector.multi_reduction <add>, %206, %cst_72 [0] : vector<2x16xf32> to vector<16xf32>
    %208 = vector.shape_cast %207 : vector<16xf32> to vector<1x16xf32>
    %209 = arith.mulf %206, %206 : vector<2x16xf32>
    %cst_73 = arith.constant dense<0.000000e+00> : vector<16xf32>
    %210 = vector.multi_reduction <add>, %209, %cst_73 [0] : vector<2x16xf32> to vector<16xf32>
    %211 = vector.shape_cast %210 : vector<16xf32> to vector<1x16xf32>
    %212 = tpu.iota {dimensions = array<i32: 0>} : vector<2x16xi32>
    %c0_i32_74 = arith.constant 0 : i32
    %213 = vector.broadcast %c0_i32_74 : i32 to vector<2x16xi32>
    %214 = arith.cmpi eq, %212, %213 : vector<2x16xi32>
    %215 = vector.shape_cast %208 : vector<1x16xf32> to vector<1x16xf32>
    %216 = vector.broadcast %215 : vector<1x16xf32> to vector<2x16xf32>
    %217 = vector.shape_cast %211 : vector<1x16xf32> to vector<1x16xf32>
    %218 = vector.broadcast %217 : vector<1x16xf32> to vector<2x16xf32>
    %219 = arith.select %214, %216, %218 : vector<2x16xi1>, vector<2x16xf32>
    %c288_75 = arith.constant 288 : index
    %c0_76 = arith.constant 0 : index
    %220 = vector.load %arg1[%c288_75, %c0_76] : memref<624x128xf32, #tpu.memory_space<vmem>>, vector<16x8xf32>
    %cst_77 = arith.constant dense<0.000000e+00> : vector<2x8xf32>
    %221 = tpu.matmul %219, %220, %cst_77 {dimension_numbers = #tpu.dot_dimension_numbers<[1], [0], [0], [1], [0, 0, 1, 1], [], []>} : vector<2x16xf32>, vector<16x8xf32>, vector<2x8xf32> -> vector<2x8xf32>
    %cst_78 = arith.constant 2.500000e-01 : f32
    %222 = vector.broadcast %cst_78 : f32 to vector<2x8xf32>
    %223 = arith.mulf %221, %222 : vector<2x8xf32>
    %224 = vector.extract_strided_slice %223 {offsets = [0, 0], sizes = [1, 8], strides = [1, 1]} : vector<2x8xf32> to vector<1x8xf32>
    %225 = vector.extract_strided_slice %223 {offsets = [1, 0], sizes = [1, 8], strides = [1, 1]} : vector<2x8xf32> to vector<1x8xf32>
    %226 = arith.mulf %224, %224 : vector<1x8xf32>
    %227 = arith.subf %225, %226 : vector<1x8xf32>
    %cst_79 = arith.constant 0.000000e+00 : f32
    %228 = vector.broadcast %cst_79 : f32 to vector<1x8xf32>
    %229 = arith.maximumf %227, %228 : vector<1x8xf32>
    %c136_80 = arith.constant 136 : index
    %c0_81 = arith.constant 0 : index
    %230 = vector.load %arg1[%c136_80, %c0_81] : memref<624x128xf32, #tpu.memory_space<vmem>>, vector<1x8xf32>
    %cst_82 = arith.constant 9.99999974E-6 : f32
    %231 = vector.broadcast %cst_82 : f32 to vector<1x8xf32>
    %232 = arith.addf %229, %231 : vector<1x8xf32>
    %233 = math.rsqrt %232 : vector<1x8xf32>
    %234 = arith.mulf %230, %233 : vector<1x8xf32>
    %c144_83 = arith.constant 144 : index
    %c0_84 = arith.constant 0 : index
    %235 = vector.load %arg1[%c144_83, %c0_84] : memref<624x128xf32, #tpu.memory_space<vmem>>, vector<1x8xf32>
    %236 = arith.mulf %224, %234 : vector<1x8xf32>
    %237 = arith.subf %235, %236 : vector<1x8xf32>
    %238 = tpu.iota {dimensions = array<i32: 0>} : vector<2x8xi32>
    %c0_i32_85 = arith.constant 0 : i32
    %239 = vector.broadcast %c0_i32_85 : i32 to vector<2x8xi32>
    %240 = arith.cmpi eq, %238, %239 : vector<2x8xi32>
    %241 = vector.shape_cast %234 : vector<1x8xf32> to vector<1x8xf32>
    %242 = vector.broadcast %241 : vector<1x8xf32> to vector<2x8xf32>
    %243 = vector.shape_cast %237 : vector<1x8xf32> to vector<1x8xf32>
    %244 = vector.broadcast %243 : vector<1x8xf32> to vector<2x8xf32>
    %245 = arith.select %240, %242, %244 : vector<2x8xi1>, vector<2x8xf32>
    %c304_86 = arith.constant 304 : index
    %c0_87 = arith.constant 0 : index
    %246 = vector.load %arg1[%c304_86, %c0_87] : memref<624x128xf32, #tpu.memory_space<vmem>>, vector<8x16xf32>
    %cst_88 = arith.constant dense<0.000000e+00> : vector<2x16xf32>
    %247 = tpu.matmul %245, %246, %cst_88 {dimension_numbers = #tpu.dot_dimension_numbers<[1], [0], [0], [1], [0, 0, 1, 1], [], []>} : vector<2x8xf32>, vector<8x16xf32>, vector<2x16xf32> -> vector<2x16xf32>
    %248 = vector.extract_strided_slice %247 {offsets = [0, 0], sizes = [1, 16], strides = [1, 1]} : vector<2x16xf32> to vector<1x16xf32>
    %249 = vector.broadcast %248 : vector<1x16xf32> to vector<2x16xf32>
    %250 = arith.mulf %206, %249 : vector<2x16xf32>
    %251 = vector.extract_strided_slice %247 {offsets = [1, 0], sizes = [1, 16], strides = [1, 1]} : vector<2x16xf32> to vector<1x16xf32>
    %252 = vector.broadcast %251 : vector<1x16xf32> to vector<2x16xf32>
    %253 = arith.addf %250, %252 : vector<2x16xf32>
    %cst_89 = arith.constant 0.000000e+00 : f32
    %254 = vector.broadcast %cst_89 : f32 to vector<2x16xf32>
    %255 = arith.maximumf %253, %254 : vector<2x16xf32>
    %256 = arith.addf %255, %153 : vector<2x16xf32>
    %c352 = arith.constant 352 : index
    %c0_90 = arith.constant 0 : index
    %257 = vector.load %arg1[%c352, %c0_90] : memref<624x128xf32, #tpu.memory_space<vmem>>, vector<16x32xf32>
    %cst_91 = arith.constant dense<0.000000e+00> : vector<2x32xf32>
    %258 = tpu.matmul %256, %257, %cst_91 {dimension_numbers = #tpu.dot_dimension_numbers<[1], [0], [0], [1], [0, 0, 1, 1], [], []>} : vector<2x16xf32>, vector<16x32xf32>, vector<2x32xf32> -> vector<2x32xf32>
    %cst_92 = arith.constant dense<0.000000e+00> : vector<32xf32>
    %259 = vector.multi_reduction <add>, %258, %cst_92 [0] : vector<2x32xf32> to vector<32xf32>
    %260 = vector.shape_cast %259 : vector<32xf32> to vector<1x32xf32>
    %261 = arith.mulf %258, %258 : vector<2x32xf32>
    %cst_93 = arith.constant dense<0.000000e+00> : vector<32xf32>
    %262 = vector.multi_reduction <add>, %261, %cst_93 [0] : vector<2x32xf32> to vector<32xf32>
    %263 = vector.shape_cast %262 : vector<32xf32> to vector<1x32xf32>
    %264 = tpu.iota {dimensions = array<i32: 0>} : vector<2x32xi32>
    %c0_i32_94 = arith.constant 0 : i32
    %265 = vector.broadcast %c0_i32_94 : i32 to vector<2x32xi32>
    %266 = arith.cmpi eq, %264, %265 : vector<2x32xi32>
    %267 = vector.shape_cast %260 : vector<1x32xf32> to vector<1x32xf32>
    %268 = vector.broadcast %267 : vector<1x32xf32> to vector<2x32xf32>
    %269 = vector.shape_cast %263 : vector<1x32xf32> to vector<1x32xf32>
    %270 = vector.broadcast %269 : vector<1x32xf32> to vector<2x32xf32>
    %271 = arith.select %266, %268, %270 : vector<2x32xi1>, vector<2x32xf32>
    %c216_95 = arith.constant 216 : index
    %c0_96 = arith.constant 0 : index
    %272 = vector.load %arg1[%c216_95, %c0_96] : memref<624x128xf32, #tpu.memory_space<vmem>>, vector<32x8xf32>
    %cst_97 = arith.constant dense<0.000000e+00> : vector<2x8xf32>
    %273 = tpu.matmul %271, %272, %cst_97 {dimension_numbers = #tpu.dot_dimension_numbers<[1], [0], [0], [1], [0, 0, 1, 1], [], []>} : vector<2x32xf32>, vector<32x8xf32>, vector<2x8xf32> -> vector<2x8xf32>
    %cst_98 = arith.constant 1.250000e-01 : f32
    %274 = vector.broadcast %cst_98 : f32 to vector<2x8xf32>
    %275 = arith.mulf %273, %274 : vector<2x8xf32>
    %276 = vector.extract_strided_slice %275 {offsets = [0, 0], sizes = [1, 8], strides = [1, 1]} : vector<2x8xf32> to vector<1x8xf32>
    %277 = vector.extract_strided_slice %275 {offsets = [1, 0], sizes = [1, 8], strides = [1, 1]} : vector<2x8xf32> to vector<1x8xf32>
    %278 = arith.mulf %276, %276 : vector<1x8xf32>
    %279 = arith.subf %277, %278 : vector<1x8xf32>
    %cst_99 = arith.constant 0.000000e+00 : f32
    %280 = vector.broadcast %cst_99 : f32 to vector<1x8xf32>
    %281 = arith.maximumf %279, %280 : vector<1x8xf32>
    %c136_100 = arith.constant 136 : index
    %c0_101 = arith.constant 0 : index
    %282 = vector.load %arg1[%c136_100, %c0_101] : memref<624x128xf32, #tpu.memory_space<vmem>>, vector<1x8xf32>
    %cst_102 = arith.constant 9.99999974E-6 : f32
    %283 = vector.broadcast %cst_102 : f32 to vector<1x8xf32>
    %284 = arith.addf %281, %283 : vector<1x8xf32>
    %285 = math.rsqrt %284 : vector<1x8xf32>
    %286 = arith.mulf %282, %285 : vector<1x8xf32>
    %c144_103 = arith.constant 144 : index
    %c0_104 = arith.constant 0 : index
    %287 = vector.load %arg1[%c144_103, %c0_104] : memref<624x128xf32, #tpu.memory_space<vmem>>, vector<1x8xf32>
    %288 = arith.mulf %276, %286 : vector<1x8xf32>
    %289 = arith.subf %287, %288 : vector<1x8xf32>
    %290 = tpu.iota {dimensions = array<i32: 0>} : vector<2x8xi32>
    %c0_i32_105 = arith.constant 0 : i32
    %291 = vector.broadcast %c0_i32_105 : i32 to vector<2x8xi32>
    %292 = arith.cmpi eq, %290, %291 : vector<2x8xi32>
    %293 = vector.shape_cast %286 : vector<1x8xf32> to vector<1x8xf32>
    %294 = vector.broadcast %293 : vector<1x8xf32> to vector<2x8xf32>
    %295 = vector.shape_cast %289 : vector<1x8xf32> to vector<1x8xf32>
    %296 = vector.broadcast %295 : vector<1x8xf32> to vector<2x8xf32>
    %297 = arith.select %292, %294, %296 : vector<2x8xi1>, vector<2x8xf32>
    %c248_106 = arith.constant 248 : index
    %c0_107 = arith.constant 0 : index
    %298 = vector.load %arg1[%c248_106, %c0_107] : memref<624x128xf32, #tpu.memory_space<vmem>>, vector<8x32xf32>
    %cst_108 = arith.constant dense<0.000000e+00> : vector<2x32xf32>
    %299 = tpu.matmul %297, %298, %cst_108 {dimension_numbers = #tpu.dot_dimension_numbers<[1], [0], [0], [1], [0, 0, 1, 1], [], []>} : vector<2x8xf32>, vector<8x32xf32>, vector<2x32xf32> -> vector<2x32xf32>
    %300 = vector.extract_strided_slice %299 {offsets = [0, 0], sizes = [1, 32], strides = [1, 1]} : vector<2x32xf32> to vector<1x32xf32>
    %301 = vector.broadcast %300 : vector<1x32xf32> to vector<2x32xf32>
    %302 = arith.mulf %258, %301 : vector<2x32xf32>
    %303 = vector.extract_strided_slice %299 {offsets = [1, 0], sizes = [1, 32], strides = [1, 1]} : vector<2x32xf32> to vector<1x32xf32>
    %304 = vector.broadcast %303 : vector<1x32xf32> to vector<2x32xf32>
    %305 = arith.addf %302, %304 : vector<2x32xf32>
    %cst_109 = arith.constant 0.000000e+00 : f32
    %306 = vector.broadcast %cst_109 : f32 to vector<2x32xf32>
    %307 = arith.maximumf %305, %306 : vector<2x32xf32>
    %308 = arith.addf %307, %102 : vector<2x32xf32>
    %c368 = arith.constant 368 : index
    %c0_110 = arith.constant 0 : index
    %309 = vector.load %arg1[%c368, %c0_110] : memref<624x128xf32, #tpu.memory_space<vmem>>, vector<32x64xf32>
    %cst_111 = arith.constant dense<0.000000e+00> : vector<2x64xf32>
    %310 = tpu.matmul %308, %309, %cst_111 {dimension_numbers = #tpu.dot_dimension_numbers<[1], [0], [0], [1], [0, 0, 1, 1], [], []>} : vector<2x32xf32>, vector<32x64xf32>, vector<2x64xf32> -> vector<2x64xf32>
    %cst_112 = arith.constant dense<0.000000e+00> : vector<64xf32>
    %311 = vector.multi_reduction <add>, %310, %cst_112 [0] : vector<2x64xf32> to vector<64xf32>
    %312 = vector.shape_cast %311 : vector<64xf32> to vector<1x64xf32>
    %313 = arith.mulf %310, %310 : vector<2x64xf32>
    %cst_113 = arith.constant dense<0.000000e+00> : vector<64xf32>
    %314 = vector.multi_reduction <add>, %313, %cst_113 [0] : vector<2x64xf32> to vector<64xf32>
    %315 = vector.shape_cast %314 : vector<64xf32> to vector<1x64xf32>
    %316 = tpu.iota {dimensions = array<i32: 0>} : vector<2x64xi32>
    %c0_i32_114 = arith.constant 0 : i32
    %317 = vector.broadcast %c0_i32_114 : i32 to vector<2x64xi32>
    %318 = arith.cmpi eq, %316, %317 : vector<2x64xi32>
    %319 = vector.shape_cast %312 : vector<1x64xf32> to vector<1x64xf32>
    %320 = vector.broadcast %319 : vector<1x64xf32> to vector<2x64xf32>
    %321 = vector.shape_cast %315 : vector<1x64xf32> to vector<1x64xf32>
    %322 = vector.broadcast %321 : vector<1x64xf32> to vector<2x64xf32>
    %323 = arith.select %318, %320, %322 : vector<2x64xi1>, vector<2x64xf32>
    %c64_115 = arith.constant 64 : index
    %c0_116 = arith.constant 0 : index
    %324 = vector.load %arg1[%c64_115, %c0_116] : memref<624x128xf32, #tpu.memory_space<vmem>>, vector<64x8xf32>
    %cst_117 = arith.constant dense<0.000000e+00> : vector<2x8xf32>
    %325 = tpu.matmul %323, %324, %cst_117 {dimension_numbers = #tpu.dot_dimension_numbers<[1], [0], [0], [1], [0, 0, 1, 1], [], []>} : vector<2x64xf32>, vector<64x8xf32>, vector<2x8xf32> -> vector<2x8xf32>
    %cst_118 = arith.constant 6.250000e-02 : f32
    %326 = vector.broadcast %cst_118 : f32 to vector<2x8xf32>
    %327 = arith.mulf %325, %326 : vector<2x8xf32>
    %328 = vector.extract_strided_slice %327 {offsets = [0, 0], sizes = [1, 8], strides = [1, 1]} : vector<2x8xf32> to vector<1x8xf32>
    %329 = vector.extract_strided_slice %327 {offsets = [1, 0], sizes = [1, 8], strides = [1, 1]} : vector<2x8xf32> to vector<1x8xf32>
    %330 = arith.mulf %328, %328 : vector<1x8xf32>
    %331 = arith.subf %329, %330 : vector<1x8xf32>
    %cst_119 = arith.constant 0.000000e+00 : f32
    %332 = vector.broadcast %cst_119 : f32 to vector<1x8xf32>
    %333 = arith.maximumf %331, %332 : vector<1x8xf32>
    %c136_120 = arith.constant 136 : index
    %c0_121 = arith.constant 0 : index
    %334 = vector.load %arg1[%c136_120, %c0_121] : memref<624x128xf32, #tpu.memory_space<vmem>>, vector<1x8xf32>
    %cst_122 = arith.constant 9.99999974E-6 : f32
    %335 = vector.broadcast %cst_122 : f32 to vector<1x8xf32>
    %336 = arith.addf %333, %335 : vector<1x8xf32>
    %337 = math.rsqrt %336 : vector<1x8xf32>
    %338 = arith.mulf %334, %337 : vector<1x8xf32>
    %c144_123 = arith.constant 144 : index
    %c0_124 = arith.constant 0 : index
    %339 = vector.load %arg1[%c144_123, %c0_124] : memref<624x128xf32, #tpu.memory_space<vmem>>, vector<1x8xf32>
    %340 = arith.mulf %328, %338 : vector<1x8xf32>
    %341 = arith.subf %339, %340 : vector<1x8xf32>
    %342 = tpu.iota {dimensions = array<i32: 0>} : vector<2x8xi32>
    %c0_i32_125 = arith.constant 0 : i32
    %343 = vector.broadcast %c0_i32_125 : i32 to vector<2x8xi32>
    %344 = arith.cmpi eq, %342, %343 : vector<2x8xi32>
    %345 = vector.shape_cast %338 : vector<1x8xf32> to vector<1x8xf32>
    %346 = vector.broadcast %345 : vector<1x8xf32> to vector<2x8xf32>
    %347 = vector.shape_cast %341 : vector<1x8xf32> to vector<1x8xf32>
    %348 = vector.broadcast %347 : vector<1x8xf32> to vector<2x8xf32>
    %349 = arith.select %344, %346, %348 : vector<2x8xi1>, vector<2x8xf32>
    %c128_126 = arith.constant 128 : index
    %c0_127 = arith.constant 0 : index
    %350 = vector.load %arg1[%c128_126, %c0_127] : memref<624x128xf32, #tpu.memory_space<vmem>>, vector<8x64xf32>
    %cst_128 = arith.constant dense<0.000000e+00> : vector<2x64xf32>
    %351 = tpu.matmul %349, %350, %cst_128 {dimension_numbers = #tpu.dot_dimension_numbers<[1], [0], [0], [1], [0, 0, 1, 1], [], []>} : vector<2x8xf32>, vector<8x64xf32>, vector<2x64xf32> -> vector<2x64xf32>
    %352 = vector.extract_strided_slice %351 {offsets = [0, 0], sizes = [1, 64], strides = [1, 1]} : vector<2x64xf32> to vector<1x64xf32>
    %353 = vector.broadcast %352 : vector<1x64xf32> to vector<2x64xf32>
    %354 = arith.mulf %310, %353 : vector<2x64xf32>
    %355 = vector.extract_strided_slice %351 {offsets = [1, 0], sizes = [1, 64], strides = [1, 1]} : vector<2x64xf32> to vector<1x64xf32>
    %356 = vector.broadcast %355 : vector<1x64xf32> to vector<2x64xf32>
    %357 = arith.addf %354, %356 : vector<2x64xf32>
    %cst_129 = arith.constant 0.000000e+00 : f32
    %358 = vector.broadcast %cst_129 : f32 to vector<2x64xf32>
    %359 = arith.maximumf %357, %358 : vector<2x64xf32>
    %360 = arith.addf %359, %51 : vector<2x64xf32>
    %c400 = arith.constant 400 : index
    %c0_130 = arith.constant 0 : index
    %361 = vector.load %arg1[%c400, %c0_130] : memref<624x128xf32, #tpu.memory_space<vmem>>, vector<64x64xf32>
    %cst_131 = arith.constant dense<0.000000e+00> : vector<2x64xf32>
    %362 = tpu.matmul %360, %361, %cst_131 {dimension_numbers = #tpu.dot_dimension_numbers<[1], [0], [0], [1], [0, 0, 1, 1], [], []>} : vector<2x64xf32>, vector<64x64xf32>, vector<2x64xf32> -> vector<2x64xf32>
    %cst_132 = arith.constant dense<0.000000e+00> : vector<64xf32>
    %363 = vector.multi_reduction <add>, %362, %cst_132 [0] : vector<2x64xf32> to vector<64xf32>
    %364 = vector.shape_cast %363 : vector<64xf32> to vector<1x64xf32>
    %365 = arith.mulf %362, %362 : vector<2x64xf32>
    %cst_133 = arith.constant dense<0.000000e+00> : vector<64xf32>
    %366 = vector.multi_reduction <add>, %365, %cst_133 [0] : vector<2x64xf32> to vector<64xf32>
    %367 = vector.shape_cast %366 : vector<64xf32> to vector<1x64xf32>
    %368 = tpu.iota {dimensions = array<i32: 0>} : vector<2x64xi32>
    %c0_i32_134 = arith.constant 0 : i32
    %369 = vector.broadcast %c0_i32_134 : i32 to vector<2x64xi32>
    %370 = arith.cmpi eq, %368, %369 : vector<2x64xi32>
    %371 = vector.shape_cast %364 : vector<1x64xf32> to vector<1x64xf32>
    %372 = vector.broadcast %371 : vector<1x64xf32> to vector<2x64xf32>
    %373 = vector.shape_cast %367 : vector<1x64xf32> to vector<1x64xf32>
    %374 = vector.broadcast %373 : vector<1x64xf32> to vector<2x64xf32>
    %375 = arith.select %370, %372, %374 : vector<2x64xi1>, vector<2x64xf32>
    %c464 = arith.constant 464 : index
    %c0_135 = arith.constant 0 : index
    %376 = vector.load %arg1[%c464, %c0_135] : memref<624x128xf32, #tpu.memory_space<vmem>>, vector<64x4xf32>
    %cst_136 = arith.constant dense<0.000000e+00> : vector<2x4xf32>
    %377 = tpu.matmul %375, %376, %cst_136 {dimension_numbers = #tpu.dot_dimension_numbers<[1], [0], [0], [1], [0, 0, 1, 1], [], []>} : vector<2x64xf32>, vector<64x4xf32>, vector<2x4xf32> -> vector<2x4xf32>
    %cst_137 = arith.constant 3.125000e-02 : f32
    %378 = vector.broadcast %cst_137 : f32 to vector<2x4xf32>
    %379 = arith.mulf %377, %378 : vector<2x4xf32>
    %380 = vector.extract_strided_slice %379 {offsets = [0, 0], sizes = [1, 4], strides = [1, 1]} : vector<2x4xf32> to vector<1x4xf32>
    %381 = vector.extract_strided_slice %379 {offsets = [1, 0], sizes = [1, 4], strides = [1, 1]} : vector<2x4xf32> to vector<1x4xf32>
    %382 = arith.mulf %380, %380 : vector<1x4xf32>
    %383 = arith.subf %381, %382 : vector<1x4xf32>
    %cst_138 = arith.constant 0.000000e+00 : f32
    %384 = vector.broadcast %cst_138 : f32 to vector<1x4xf32>
    %385 = arith.maximumf %383, %384 : vector<1x4xf32>
    %c536 = arith.constant 536 : index
    %c0_139 = arith.constant 0 : index
    %386 = vector.load %arg1[%c536, %c0_139] : memref<624x128xf32, #tpu.memory_space<vmem>>, vector<1x4xf32>
    %cst_140 = arith.constant 9.99999974E-6 : f32
    %387 = vector.broadcast %cst_140 : f32 to vector<1x4xf32>
    %388 = arith.addf %385, %387 : vector<1x4xf32>
    %389 = math.rsqrt %388 : vector<1x4xf32>
    %390 = arith.mulf %386, %389 : vector<1x4xf32>
    %c544 = arith.constant 544 : index
    %c0_141 = arith.constant 0 : index
    %391 = vector.load %arg1[%c544, %c0_141] : memref<624x128xf32, #tpu.memory_space<vmem>>, vector<1x4xf32>
    %392 = arith.mulf %380, %390 : vector<1x4xf32>
    %393 = arith.subf %391, %392 : vector<1x4xf32>
    %394 = tpu.iota {dimensions = array<i32: 0>} : vector<2x4xi32>
    %c0_i32_142 = arith.constant 0 : i32
    %395 = vector.broadcast %c0_i32_142 : i32 to vector<2x4xi32>
    %396 = arith.cmpi eq, %394, %395 : vector<2x4xi32>
    %397 = vector.shape_cast %390 : vector<1x4xf32> to vector<1x4xf32>
    %398 = vector.broadcast %397 : vector<1x4xf32> to vector<2x4xf32>
    %399 = vector.shape_cast %393 : vector<1x4xf32> to vector<1x4xf32>
    %400 = vector.broadcast %399 : vector<1x4xf32> to vector<2x4xf32>
    %401 = arith.select %396, %398, %400 : vector<2x4xi1>, vector<2x4xf32>
    %c528 = arith.constant 528 : index
    %c0_143 = arith.constant 0 : index
    %402 = vector.load %arg1[%c528, %c0_143] : memref<624x128xf32, #tpu.memory_space<vmem>>, vector<4x64xf32>
    %cst_144 = arith.constant dense<0.000000e+00> : vector<2x64xf32>
    %403 = tpu.matmul %401, %402, %cst_144 {dimension_numbers = #tpu.dot_dimension_numbers<[1], [0], [0], [1], [0, 0, 1, 1], [], []>} : vector<2x4xf32>, vector<4x64xf32>, vector<2x64xf32> -> vector<2x64xf32>
    %404 = vector.extract_strided_slice %403 {offsets = [0, 0], sizes = [1, 64], strides = [1, 1]} : vector<2x64xf32> to vector<1x64xf32>
    %405 = vector.broadcast %404 : vector<1x64xf32> to vector<2x64xf32>
    %406 = arith.mulf %362, %405 : vector<2x64xf32>
    %407 = vector.extract_strided_slice %403 {offsets = [1, 0], sizes = [1, 64], strides = [1, 1]} : vector<2x64xf32> to vector<1x64xf32>
    %408 = vector.broadcast %407 : vector<1x64xf32> to vector<2x64xf32>
    %409 = arith.addf %406, %408 : vector<2x64xf32>
    %cst_145 = arith.constant 0.000000e+00 : f32
    %410 = vector.broadcast %cst_145 : f32 to vector<2x64xf32>
    %411 = arith.maximumf %409, %410 : vector<2x64xf32>
    %c552 = arith.constant 552 : index
    %c0_146 = arith.constant 0 : index
    %412 = vector.load %arg1[%c552, %c0_146] : memref<624x128xf32, #tpu.memory_space<vmem>>, vector<64x32xf32>
    %cst_147 = arith.constant dense<0.000000e+00> : vector<2x32xf32>
    %413 = tpu.matmul %411, %412, %cst_147 {dimension_numbers = #tpu.dot_dimension_numbers<[1], [0], [0], [1], [0, 0, 1, 1], [], []>} : vector<2x64xf32>, vector<64x32xf32>, vector<2x32xf32> -> vector<2x32xf32>
    %c616 = arith.constant 616 : index
    %c0_148 = arith.constant 0 : index
    %414 = vector.load %arg1[%c616, %c0_148] : memref<624x128xf32, #tpu.memory_space<vmem>>, vector<1x32xf32>
    %415 = vector.broadcast %414 : vector<1x32xf32> to vector<2x32xf32>
    %416 = arith.addf %413, %415 : vector<2x32xf32>
    %c0_149 = arith.constant 0 : index
    %c0_150 = arith.constant 0 : index
    %417 = vector.load %arg2[%c0_149, %c0_150] : memref<2x32xf32, #tpu.memory_space<vmem>>, vector<2x32xf32>
    tpu.vector_store %arg2[%c0_149, %c0_150], %416 {strides = array<i32>} : memref<2x32xf32, #tpu.memory_space<vmem>>, vector<2x32xf32>,
    return
  }
}

</mosaic_0001>

<llo_original>
// kernel: forward.1
$region0: #{forward.1}
  #allocation0 [shape = 'u32[]', space=smem, size = 0x4, offset = 0x4, fixed_abs, tag = 'smem constant byte address 0x4 - core index']
  #allocation1 [shape = 'u32[72,128]{1,0:T(1,128)}', space=vmem, size = 0x9000, scoped, tag = 'internal scratch']
  %s0 = inlined_call_operand.vmem [shape: f32[2,64], index: 0, kind: input, shape index: {}]
  %s1 = inlined_call_operand.hbm [shape: f32[624,128], index: 1, kind: input, shape index: {}]
  %s2 = inlined_call_operand.vmem [shape: f32[2,32], index: 2, kind: output, shape index: {}]
  %s3 = sld [smem:[#allocation0]]
  $region22: #{forward.1} parent=0
    _
  %s5 = ssub.s32 1, %s3
  %s6 = scalar_select 0, %s5, %s3
  $region1: #{forward.1} parent=0
    #allocation2 [shape = 'u8[319488]{0}', space=vmem, size = 0x4e000, scoped, tag = 'input window, operand 1, single buffered']
    #allocation3 [shape = 's32[1]{0}', space=sflag, size = 0x4, scoped, tag = 'scoped memory for forward.1']
    %7 = vsyncpa [#allocation3], 0
    // Predicated region
    $region2: #{forward.1} parent=1 // pred_check
      _
    $region3: #{forward.1} parent=1 // pred_check_branch
      %9 = sbr.rel (0) target = $region5
    $region4: #{forward.1} parent=1 // pred_region
      _
    $region5: #{forward.1} parent=1 // pred_fallthru
      _
    // Predicated region
    $region6: #{forward.1} parent=1 // pred_check
      _
    $region7: #{forward.1} parent=1 // pred_check_branch
      %11 = sbr.rel (0) target = $region9
    $region8: #{forward.1} parent=1 // pred_region
      %13 = vsyncadd [#allocation3], 0
      %s14 = sshll.u32 %s1, 4
      %s15 = int_to_ptr.hbm [resolvable:$true] %s14
      %s16 = sshll.u32 [#allocation2], 4
      %s17 = int_to_ptr.vmem [resolvable:$true] %s16
      %22 = dma.hbm_to_vmem [thread:$0]  %s15, 9984, %s17, [#allocation3], 128, 128, 8
    $region9: #{forward.1} parent=1 // pred_fallthru
      _
    // Predicated region
    $region10: #{forward.1} parent=1 // pred_check
      _
    $region11: #{forward.1} parent=1 // pred_check_branch
      %24 = sbr.rel (0) target = $region13
    $region12: #{forward.1} parent=1 // pred_region
      %26 = dma.done [#allocation3], 9984
    $region13: #{forward.1} parent=1 // pred_fallthru
      _
    %v27 = vld [vmem:[%s0] sm:$0x3]
    %v28 = vld [vmem:[#allocation2] sm:$0xff]
    %v29 = vld [vmem:[#allocation2 + $0x8] sm:$0xff]
    %v30 = vld [vmem:[#allocation2 + $0x10] sm:$0xff]
    %v31 = vld [vmem:[#allocation2 + $0x18] sm:$0xff]
    %v32 = vld [vmem:[#allocation2 + $0x20] sm:$0xff]
    %v33 = vld [vmem:[#allocation2 + $0x28] sm:$0xff]
    %v34 = vld [vmem:[#allocation2 + $0x30] sm:$0xff]
    %v35 = vld [vmem:[#allocation2 + $0x38] sm:$0xff]
    %vm36 = vcmask 523264
    %v38 = vsel %vm36, %v27, 0
    %40 = vmatpush.msra.mxu0 0.0
    %41 = vmatpush.msra.mxu0 0.0
    %42 = vmatpush.msra.mxu0 0.0
    %43 = vmatpush.msra.mxu0 0.0
    %44 = vmatpush.msra.mxu0 0.0
    %45 = vmatpush.msra.mxu0 0.0
    %46 = vmatpush.msra.mxu0 0.0
    %47 = vmatpush.msra.mxu0 0.0
    %48 = vmatpush.msra.mxu0 %v35
    %49 = vmatpush.msra.mxu0 %v34
    %50 = vmatpush.msra.mxu0 %v33
    %51 = vmatpush.msra.mxu0 %v32
    %52 = vmatpush.msra.mxu0 %v31
    %53 = vmatpush.msra.mxu0 %v30
    %54 = vmatpush.msra.mxu0 %v29
    %55 = vmatpush.msra.mxu0 %v28
    %56 = vmatmul.f32.gmra.mxu0 %v38
    %v57 = vpop.f32.mrf.mxu0
    %v58 = vadd.f32 0.0, %v57
    %59 = vdwg.mxu0
    %vm60 = vcmask 517120
    %v61 = vsel %vm60, %v58, 0.0
    %v62 = vrot.slane %v61, 4
    %v63 = vadd.f32 %v61, %v62
    %v64 = vrot.slane %v63, 2
    %v65 = vadd.f32 %v63, %v64
    %v66 = vrot.slane %v65, 1
    %v67 = vadd.f32 %v65, %v66
    %v68 = vmul.f32 %v58, %v58
    %v69 = vsel %vm60, %v68, 0.0
    %v70 = vrot.slane %v69, 4
    %v71 = vadd.f32 %v69, %v70
    %v72 = vrot.slane %v71, 2
    %v73 = vadd.f32 %v71, %v72
    %v74 = vrot.slane %v73, 1
    %v75 = vadd.f32 %v73, %v74
    %v76 = vlaneseq
    %v77 = vshrl.u32 %v76, 7
    %vm78 = vcmp.eq.s32.totalorder %v77, 0
    %v79 = vsel %vm78, %v67, %v75
    %v80 = vld [vmem:[#allocation2 + $0x40] sm:$0xff]
    %v81 = vld [vmem:[#allocation2 + $0x48] sm:$0xff]
    %v82 = vld [vmem:[#allocation2 + $0x50] sm:$0xff]
    %v83 = vld [vmem:[#allocation2 + $0x58] sm:$0xff]
    %v84 = vld [vmem:[#allocation2 + $0x60] sm:$0xff]
    %v85 = vld [vmem:[#allocation2 + $0x68] sm:$0xff]
    %v86 = vld [vmem:[#allocation2 + $0x70] sm:$0xff]
    %v87 = vld [vmem:[#allocation2 + $0x78] sm:$0xff]
    %v89 = vsel %vm36, %v79, 0
    %91 = vmatpush.msra.mxu0 0.0
    %92 = vmatpush.msra.mxu0 0.0
    %93 = vmatpush.msra.mxu0 0.0
    %94 = vmatpush.msra.mxu0 0.0
    %95 = vmatpush.msra.mxu0 0.0
    %96 = vmatpush.msra.mxu0 0.0
    %97 = vmatpush.msra.mxu0 0.0
    %98 = vmatpush.msra.mxu0 0.0
    %99 = vmatpush.msra.mxu0 %v87
    %100 = vmatpush.msra.mxu0 %v86
    %101 = vmatpush.msra.mxu0 %v85
    %102 = vmatpush.msra.mxu0 %v84
    %103 = vmatpush.msra.mxu0 %v83
    %104 = vmatpush.msra.mxu0 %v82
    %105 = vmatpush.msra.mxu0 %v81
    %106 = vmatpush.msra.mxu0 %v80
    %107 = vmatmul.f32.gmra.mxu0 %v89
    %v108 = vpop.f32.mrf.mxu0
    %v109 = vadd.f32 0.0, %v108
    %110 = vdwg.mxu0
    %v111 = vmul.f32 %v109, 0.0625
    %v112 = vmul.f32 %v111, %v111
    %v114 = vrot.slane %v112, 7
    %v116 = vsub.f32 %v111, %v114
    %v117 = vmax.f32 %v116, 0.0
    %v118 = vld [vmem:[#allocation2 + $0x88] sm:$0x1]
    %v119 = vadd.f32 %v117, 1e-05
    %v120 = vrsqrt.pop %v119
    %v121 = vmul.f32 %v120, %v119
    %v122 = vmul.f32 %v121, %v120
    %v123 = vmul.f32 0.5, %v122
    %v124 = vsub.f32 1.5, %v123
    %v125 = vmul.f32 %v120, %v124
    %vm126 = vweird.f32 %v119
    %vm127 = vweird.f32 %v120
    %vm128 = vmor %vm126, %vm127
    %v129 = vsel %vm128, %v120, %v125
    %v131 = vrot.slane %v129, 1
    %v133 = vmul.f32 %v118, %v131
    %v134 = vld [vmem:[#allocation2 + $0x90] sm:$0x1]
    %v135 = vmul.f32 %v111, %v133
    %v136 = vsub.f32 %v134, %v135
    %v137 = vperm.slane %v133, 0
    %v138 = vperm.slane %v136, 0
    %v139 = vsel %vm78, %v137, %v138
    %v140 = vld [vmem:[#allocation2 + $0x80] sm:$0xff]
    %vm141 = vcmask 64512
    %v143 = vsel %vm141, %v139, 0
    %145 = vmatpush.msra.mxu0 0.0
    %146 = vmatpush.msra.mxu0 0.0
    %147 = vmatpush.msra.mxu0 0.0
    %148 = vmatpush.msra.mxu0 0.0
    %149 = vmatpush.msra.mxu0 0.0
    %150 = vmatpush.msra.mxu0 0.0
    %151 = vmatpush.msra.mxu0 0.0
    %152 = vmatpush.msra.mxu0 0.0
    %153 = vmatpush.msra.mxu0 0.0
    %154 = vmatpush.msra.mxu0 0.0
    %155 = vmatpush.msra.mxu0 0.0
    %156 = vmatpush.msra.mxu0 0.0
    %157 = vmatpush.msra.mxu0 0.0
    %158 = vmatpush.msra.mxu0 0.0
    %159 = vmatpush.msra.mxu0 0.0
    %160 = vmatpush.msra.mxu0 %v140
    %161 = vmatmul.f32.gmra.mxu0 %v143
    %v162 = vpop.f32.mrf.mxu0
    %v163 = vadd.f32 0.0, %v162
    %164 = vdwg.mxu0
    %v165 = vperm.slane %v163, 0
    %v166 = vmul.f32 %v58, %v165
    %v167 = vperm.slane %v163, 1
    %v168 = vadd.f32 %v166, %v167
    %v169 = vmax.f32 %v168, 0.0
    %v170 = vld [vmem:[#allocation2 + $0x98] sm:$0xff]
    %v171 = vld [vmem:[#allocation2 + $0xa0] sm:$0xff]
    %v172 = vld [vmem:[#allocation2 + $0xa8] sm:$0xff]
    %v173 = vld [vmem:[#allocation2 + $0xb0] sm:$0xff]
    %v174 = vld [vmem:[#allocation2 + $0xb8] sm:$0xff]
    %v175 = vld [vmem:[#allocation2 + $0xc0] sm:$0xff]
    %v176 = vld [vmem:[#allocation2 + $0xc8] sm:$0xff]
    %v177 = vld [vmem:[#allocation2 + $0xd0] sm:$0xff]
    %v179 = vsel %vm36, %v169, 0
    %181 = vmatpush.msra.mxu0 0.0
    %182 = vmatpush.msra.mxu0 0.0
    %183 = vmatpush.msra.mxu0 0.0
    %184 = vmatpush.msra.mxu0 0.0
    %185 = vmatpush.msra.mxu0 0.0
    %186 = vmatpush.msra.mxu0 0.0
    %187 = vmatpush.msra.mxu0 0.0
    %188 = vmatpush.msra.mxu0 0.0
    %189 = vmatpush.msra.mxu0 %v177
    %190 = vmatpush.msra.mxu0 %v176
    %191 = vmatpush.msra.mxu0 %v175
    %192 = vmatpush.msra.mxu0 %v174
    %193 = vmatpush.msra.mxu0 %v173
    %194 = vmatpush.msra.mxu0 %v172
    %195 = vmatpush.msra.mxu0 %v171
    %196 = vmatpush.msra.mxu0 %v170
    %197 = vmatmul.f32.gmra.mxu0 %v179
    %v198 = vpop.f32.mrf.mxu0
    %v199 = vadd.f32 0.0, %v198
    %200 = vdwg.mxu0
    %vm201 = vcmask 254976
    %v202 = vsel %vm201, %v199, 0.0
    %v203 = vrot.slane %v202, 4
    %v204 = vadd.f32 %v202, %v203
    %v205 = vrot.slane %v204, 2
    %v206 = vadd.f32 %v204, %v205
    %v207 = vrot.slane %v206, 1
    %v208 = vadd.f32 %v206, %v207
    %v209 = vmul.f32 %v199, %v199
    %v210 = vsel %vm201, %v209, 0.0
    %v211 = vrot.slane %v210, 4
    %v212 = vadd.f32 %v210, %v211
    %v213 = vrot.slane %v212, 2
    %v214 = vadd.f32 %v212, %v213
    %v215 = vrot.slane %v214, 1
    %v216 = vadd.f32 %v214, %v215
    %v217 = vsel %vm78, %v208, %v216
    %v218 = vld [vmem:[#allocation2 + $0xd8] sm:$0xff]
    %v219 = vld [vmem:[#allocation2 + $0xe0] sm:$0xff]
    %v220 = vld [vmem:[#allocation2 + $0xe8] sm:$0xff]
    %v221 = vld [vmem:[#allocation2 + $0xf0] sm:$0xff]
    %vm222 = vcmask 261120
    %v224 = vsel %vm222, %v217, 0
    %226 = vmatpush.msra.mxu0 0.0
    %227 = vmatpush.msra.mxu0 0.0
    %228 = vmatpush.msra.mxu0 0.0
    %229 = vmatpush.msra.mxu0 0.0
    %230 = vmatpush.msra.mxu0 0.0
    %231 = vmatpush.msra.mxu0 0.0
    %232 = vmatpush.msra.mxu0 0.0
    %233 = vmatpush.msra.mxu0 0.0
    %234 = vmatpush.msra.mxu0 0.0
    %235 = vmatpush.msra.mxu0 0.0
    %236 = vmatpush.msra.mxu0 0.0
    %237 = vmatpush.msra.mxu0 0.0
    %238 = vmatpush.msra.mxu0 %v221
    %239 = vmatpush.msra.mxu0 %v220
    %240 = vmatpush.msra.mxu0 %v219
    %241 = vmatpush.msra.mxu0 %v218
    %242 = vmatmul.f32.gmra.mxu0 %v224
    %v243 = vpop.f32.mrf.mxu0
    %v244 = vadd.f32 0.0, %v243
    %245 = vdwg.mxu0
    %v246 = vmul.f32 %v244, 0.125
    %v247 = vmul.f32 %v246, %v246
    %v249 = vrot.slane %v247, 7
    %v251 = vsub.f32 %v246, %v249
    %v252 = vmax.f32 %v251, 0.0
    %v253 = vadd.f32 %v252, 1e-05
    %v254 = vrsqrt.pop %v253
    %v255 = vmul.f32 %v254, %v253
    %v256 = vmul.f32 %v255, %v254
    %v257 = vmul.f32 0.5, %v256
    %v258 = vsub.f32 1.5, %v257
    %v259 = vmul.f32 %v254, %v258
    %vm260 = vweird.f32 %v253
    %vm261 = vweird.f32 %v254
    %vm262 = vmor %vm260, %vm261
    %v263 = vsel %vm262, %v254, %v259
    %v265 = vrot.slane %v263, 1
    %v267 = vmul.f32 %v118, %v265
    %v268 = vmul.f32 %v246, %v267
    %v269 = vsub.f32 %v134, %v268
    %v270 = vperm.slane %v267, 0
    %v271 = vperm.slane %v269, 0
    %v272 = vsel %vm78, %v270, %v271
    %v273 = vld [vmem:[#allocation2 + $0xf8] sm:$0xff]
    %v275 = vsel %vm141, %v272, 0
    %277 = vmatpush.msra.mxu0 0.0
    %278 = vmatpush.msra.mxu0 0.0
    %279 = vmatpush.msra.mxu0 0.0
    %280 = vmatpush.msra.mxu0 0.0
    %281 = vmatpush.msra.mxu0 0.0
    %282 = vmatpush.msra.mxu0 0.0
    %283 = vmatpush.msra.mxu0 0.0
    %284 = vmatpush.msra.mxu0 0.0
    %285 = vmatpush.msra.mxu0 0.0
    %286 = vmatpush.msra.mxu0 0.0
    %287 = vmatpush.msra.mxu0 0.0
    %288 = vmatpush.msra.mxu0 0.0
    %289 = vmatpush.msra.mxu0 0.0
    %290 = vmatpush.msra.mxu0 0.0
    %291 = vmatpush.msra.mxu0 0.0
    %292 = vmatpush.msra.mxu0 %v273
    %293 = vmatmul.f32.gmra.mxu0 %v275
    %v294 = vpop.f32.mrf.mxu0
    %v295 = vadd.f32 0.0, %v294
    %296 = vdwg.mxu0
    %v297 = vperm.slane %v295, 0
    %v298 = vmul.f32 %v199, %v297
    %v299 = vperm.slane %v295, 1
    %v300 = vadd.f32 %v298, %v299
    %v301 = vmax.f32 %v300, 0.0
    %v302 = vld [vmem:[#allocation2 + $0x100] sm:$0xff]
    %v303 = vld [vmem:[#allocation2 + $0x108] sm:$0xff]
    %v304 = vld [vmem:[#allocation2 + $0x110] sm:$0xff]
    %v305 = vld [vmem:[#allocation2 + $0x118] sm:$0xff]
    %v307 = vsel %vm222, %v301, 0
    %309 = vmatpush.msra.mxu0 0.0
    %310 = vmatpush.msra.mxu0 0.0
    %311 = vmatpush.msra.mxu0 0.0
    %312 = vmatpush.msra.mxu0 0.0
    %313 = vmatpush.msra.mxu0 0.0
    %314 = vmatpush.msra.mxu0 0.0
    %315 = vmatpush.msra.mxu0 0.0
    %316 = vmatpush.msra.mxu0 0.0
    %317 = vmatpush.msra.mxu0 0.0
    %318 = vmatpush.msra.mxu0 0.0
    %319 = vmatpush.msra.mxu0 0.0
    %320 = vmatpush.msra.mxu0 0.0
    %321 = vmatpush.msra.mxu0 %v305
    %322 = vmatpush.msra.mxu0 %v304
    %323 = vmatpush.msra.mxu0 %v303
    %324 = vmatpush.msra.mxu0 %v302
    %325 = vmatmul.f32.gmra.mxu0 %v307
    %v326 = vpop.f32.mrf.mxu0
    %v327 = vadd.f32 0.0, %v326
    %328 = vdwg.mxu0
    %vm329 = vcmask 123904
    %v330 = vsel %vm329, %v327, 0.0
    %v331 = vrot.slane %v330, 4
    %v332 = vadd.f32 %v330, %v331
    %v333 = vrot.slane %v332, 2
    %v334 = vadd.f32 %v332, %v333
    %v335 = vrot.slane %v334, 1
    %v336 = vadd.f32 %v334, %v335
    %v337 = vmul.f32 %v327, %v327
    %v338 = vsel %vm329, %v337, 0.0
    %v339 = vrot.slane %v338, 4
    %v340 = vadd.f32 %v338, %v339
    %v341 = vrot.slane %v340, 2
    %v342 = vadd.f32 %v340, %v341
    %v343 = vrot.slane %v342, 1
    %v344 = vadd.f32 %v342, %v343
    %v345 = vsel %vm78, %v336, %v344
    %v346 = vld [vmem:[#allocation2 + $0x120] sm:$0xff]
    %v347 = vld [vmem:[#allocation2 + $0x128] sm:$0xff]
    %vm348 = vcmask 130048
    %v350 = vsel %vm348, %v345, 0
    %352 = vmatpush.msra.mxu0 0.0
    %353 = vmatpush.msra.mxu0 0.0
    %354 = vmatpush.msra.mxu0 0.0
    %355 = vmatpush.msra.mxu0 0.0
    %356 = vmatpush.msra.mxu0 0.0
    %357 = vmatpush.msra.mxu0 0.0
    %358 = vmatpush.msra.mxu0 0.0
    %359 = vmatpush.msra.mxu0 0.0
    %360 = vmatpush.msra.mxu0 0.0
    %361 = vmatpush.msra.mxu0 0.0
    %362 = vmatpush.msra.mxu0 0.0
    %363 = vmatpush.msra.mxu0 0.0
    %364 = vmatpush.msra.mxu0 0.0
    %365 = vmatpush.msra.mxu0 0.0
    %366 = vmatpush.msra.mxu0 %v347
    %367 = vmatpush.msra.mxu0 %v346
    %368 = vmatmul.f32.gmra.mxu0 %v350
    %v369 = vpop.f32.mrf.mxu0
    %v370 = vadd.f32 0.0, %v369
    %371 = vdwg.mxu0
    %v372 = vmul.f32 %v370, 0.25
    %v373 = vmul.f32 %v372, %v372
    %v375 = vrot.slane %v373, 7
    %v377 = vsub.f32 %v372, %v375
    %v378 = vmax.f32 %v377, 0.0
    %v379 = vadd.f32 %v378, 1e-05
    %v380 = vrsqrt.pop %v379
    %v381 = vmul.f32 %v380, %v379
    %v382 = vmul.f32 %v381, %v380
    %v383 = vmul.f32 0.5, %v382
    %v384 = vsub.f32 1.5, %v383
    %v385 = vmul.f32 %v380, %v384
    %vm386 = vweird.f32 %v379
    %vm387 = vweird.f32 %v380
    %vm388 = vmor %vm386, %vm387
    %v389 = vsel %vm388, %v380, %v385
    %v391 = vrot.slane %v389, 1
    %v393 = vmul.f32 %v118, %v391
    %v394 = vmul.f32 %v372, %v393
    %v395 = vsub.f32 %v134, %v394
    %v396 = vperm.slane %v393, 0
    %v397 = vperm.slane %v395, 0
    %v398 = vsel %vm78, %v396, %v397
    %v399 = vld [vmem:[#allocation2 + $0x130] sm:$0xff]
    %v401 = vsel %vm141, %v398, 0
    %403 = vmatpush.msra.mxu0 0.0
    %404 = vmatpush.msra.mxu0 0.0
    %405 = vmatpush.msra.mxu0 0.0
    %406 = vmatpush.msra.mxu0 0.0
    %407 = vmatpush.msra.mxu0 0.0
    %408 = vmatpush.msra.mxu0 0.0
    %409 = vmatpush.msra.mxu0 0.0
    %410 = vmatpush.msra.mxu0 0.0
    %411 = vmatpush.msra.mxu0 0.0
    %412 = vmatpush.msra.mxu0 0.0
    %413 = vmatpush.msra.mxu0 0.0
    %414 = vmatpush.msra.mxu0 0.0
    %415 = vmatpush.msra.mxu0 0.0
    %416 = vmatpush.msra.mxu0 0.0
    %417 = vmatpush.msra.mxu0 0.0
    %418 = vmatpush.msra.mxu0 %v399
    %419 = vmatmul.f32.gmra.mxu0 %v401
    %v420 = vpop.f32.mrf.mxu0
    %v421 = vadd.f32 0.0, %v420
    %422 = vdwg.mxu0
    %v423 = vperm.slane %v421, 0
    %v424 = vmul.f32 %v327, %v423
    %v425 = vperm.slane %v421, 1
    %v426 = vadd.f32 %v424, %v425
    %v427 = vmax.f32 %v426, 0.0
    %v428 = vld [vmem:[#allocation2 + $0x138] sm:$0xff]
    %v429 = vld [vmem:[#allocation2 + $0x140] sm:$0xff]
    %v431 = vsel %vm348, %v427, 0
    %433 = vmatpush.msra.mxu0 0.0
    %434 = vmatpush.msra.mxu0 0.0
    %435 = vmatpush.msra.mxu0 0.0
    %436 = vmatpush.msra.mxu0 0.0
    %437 = vmatpush.msra.mxu0 0.0
    %438 = vmatpush.msra.mxu0 0.0
    %439 = vmatpush.msra.mxu0 0.0
    %440 = vmatpush.msra.mxu0 0.0
    %441 = vmatpush.msra.mxu0 0.0
    %442 = vmatpush.msra.mxu0 0.0
    %443 = vmatpush.msra.mxu0 0.0
    %444 = vmatpush.msra.mxu0 0.0
    %445 = vmatpush.msra.mxu0 0.0
    %446 = vmatpush.msra.mxu0 0.0
    %447 = vmatpush.msra.mxu0 %v429
    %448 = vmatpush.msra.mxu0 %v428
    %449 = vmatmul.f32.gmra.mxu0 %v431
    %v450 = vpop.f32.mrf.mxu0
    %v451 = vadd.f32 0.0, %v450
    %452 = vdwg.mxu0
    %vm453 = vcmask 58368
    %v454 = vsel %vm453, %v451, 0.0
    %v455 = vrot.slane %v454, 4
    %v456 = vadd.f32 %v454, %v455
    %v457 = vrot.slane %v456, 2
    %v458 = vadd.f32 %v456, %v457
    %v459 = vrot.slane %v458, 1
    %v460 = vadd.f32 %v458, %v459
    %v461 = vmul.f32 %v451, %v451
    %v462 = vsel %vm453, %v461, 0.0
    %v463 = vrot.slane %v462, 4
    %v464 = vadd.f32 %v462, %v463
    %v465 = vrot.slane %v464, 2
    %v466 = vadd.f32 %v464, %v465
    %v467 = vrot.slane %v466, 1
    %v468 = vadd.f32 %v466, %v467
    %v469 = vsel %vm78, %v460, %v468
    %v470 = vld [vmem:[#allocation2 + $0x148] sm:$0xff]
    %v472 = vsel %vm141, %v469, 0
    %474 = vmatpush.msra.mxu0 0.0
    %475 = vmatpush.msra.mxu0 0.0
    %476 = vmatpush.msra.mxu0 0.0
    %477 = vmatpush.msra.mxu0 0.0
    %478 = vmatpush.msra.mxu0 0.0
    %479 = vmatpush.msra.mxu0 0.0
    %480 = vmatpush.msra.mxu0 0.0
    %481 = vmatpush.msra.mxu0 0.0
    %482 = vmatpush.msra.mxu0 0.0
    %483 = vmatpush.msra.mxu0 0.0
    %484 = vmatpush.msra.mxu0 0.0
    %485 = vmatpush.msra.mxu0 0.0
    %486 = vmatpush.msra.mxu0 0.0
    %487 = vmatpush.msra.mxu0 0.0
    %488 = vmatpush.msra.mxu0 0.0
    %489 = vmatpush.msra.mxu0 %v470
    %490 = vmatmul.f32.gmra.mxu0 %v472
    %v491 = vpop.f32.mrf.mxu0
    %v492 = vadd.f32 0.0, %v491
    %493 = vdwg.mxu0
    %v494 = vmul.f32 %v492, 0.5
    %v495 = vmul.f32 %v494, %v494
    %v497 = vrot.slane %v495, 7
    %v499 = vsub.f32 %v494, %v497
    %v500 = vmax.f32 %v499, 0.0
    %v501 = vadd.f32 %v500, 1e-05
    %v502 = vrsqrt.pop %v501
    %v503 = vmul.f32 %v502, %v501
    %v504 = vmul.f32 %v503, %v502
    %v505 = vmul.f32 0.5, %v504
    %v506 = vsub.f32 1.5, %v505
    %v507 = vmul.f32 %v502, %v506
    %vm508 = vweird.f32 %v501
    %vm509 = vweird.f32 %v502
    %vm510 = vmor %vm508, %vm509
    %v511 = vsel %vm510, %v502, %v507
    %v513 = vrot.slane %v511, 1
    %v515 = vmul.f32 %v118, %v513
    %v516 = vmul.f32 %v494, %v515
    %v517 = vsub.f32 %v134, %v516
    %v518 = vperm.slane %v515, 0
    %v519 = vperm.slane %v517, 0
    %v520 = vsel %vm78, %v518, %v519
    %v521 = vld [vmem:[#allocation2 + $0x150] sm:$0xff]
    %v523 = vsel %vm141, %v520, 0
    %525 = vmatpush.msra.mxu0 0.0
    %526 = vmatpush.msra.mxu0 0.0
    %527 = vmatpush.msra.mxu0 0.0
    %528 = vmatpush.msra.mxu0 0.0
    %529 = vmatpush.msra.mxu0 0.0
    %530 = vmatpush.msra.mxu0 0.0
    %531 = vmatpush.msra.mxu0 0.0
    %532 = vmatpush.msra.mxu0 0.0
    %533 = vmatpush.msra.mxu0 0.0
    %534 = vmatpush.msra.mxu0 0.0
    %535 = vmatpush.msra.mxu0 0.0
    %536 = vmatpush.msra.mxu0 0.0
    %537 = vmatpush.msra.mxu0 0.0
    %538 = vmatpush.msra.mxu0 0.0
    %539 = vmatpush.msra.mxu0 0.0
    %540 = vmatpush.msra.mxu0 %v521
    %541 = vmatmul.f32.gmra.mxu0 %v523
    %v542 = vpop.f32.mrf.mxu0
    %v543 = vadd.f32 0.0, %v542
    %544 = vdwg.mxu0
    %v545 = vperm.slane %v543, 0
    %v546 = vmul.f32 %v451, %v545
    %v547 = vperm.slane %v543, 1
    %v548 = vadd.f32 %v546, %v547
    %v549 = vmax.f32 %v548, 0.0
    %v550 = vld [vmem:[#allocation2 + $0x158] sm:$0xff]
    %v552 = vsel %vm141, %v549, 0
    %554 = vmatpush.msra.mxu0 0.0
    %555 = vmatpush.msra.mxu0 0.0
    %556 = vmatpush.msra.mxu0 0.0
    %557 = vmatpush.msra.mxu0 0.0
    %558 = vmatpush.msra.mxu0 0.0
    %559 = vmatpush.msra.mxu0 0.0
    %560 = vmatpush.msra.mxu0 0.0
    %561 = vmatpush.msra.mxu0 0.0
    %562 = vmatpush.msra.mxu0 0.0
    %563 = vmatpush.msra.mxu0 0.0
    %564 = vmatpush.msra.mxu0 0.0
    %565 = vmatpush.msra.mxu0 0.0
    %566 = vmatpush.msra.mxu0 0.0
    %567 = vmatpush.msra.mxu0 0.0
    %568 = vmatpush.msra.mxu0 0.0
    %569 = vmatpush.msra.mxu0 %v550
    %570 = vmatmul.f32.gmra.mxu0 %v552
    %v571 = vpop.f32.mrf.mxu0
    %v572 = vadd.f32 0.0, %v571
    %573 = vdwg.mxu0
    %v574 = vsel %vm329, %v572, 0.0
    %v575 = vrot.slane %v574, 4
    %v576 = vadd.f32 %v574, %v575
    %v577 = vrot.slane %v576, 2
    %v578 = vadd.f32 %v576, %v577
    %v579 = vrot.slane %v578, 1
    %v580 = vadd.f32 %v578, %v579
    %v581 = vmul.f32 %v572, %v572
    %v582 = vsel %vm329, %v581, 0.0
    %v583 = vrot.slane %v582, 4
    %v584 = vadd.f32 %v582, %v583
    %v585 = vrot.slane %v584, 2
    %v586 = vadd.f32 %v584, %v585
    %v587 = vrot.slane %v586, 1
    %v588 = vadd.f32 %v586, %v587
    %v589 = vsel %vm78, %v580, %v588
    %v591 = vsel %vm348, %v589, 0
    %593 = vmatpush.msra.mxu0 0.0
    %594 = vmatpush.msra.mxu0 0.0
    %595 = vmatpush.msra.mxu0 0.0
    %596 = vmatpush.msra.mxu0 0.0
    %597 = vmatpush.msra.mxu0 0.0
    %598 = vmatpush.msra.mxu0 0.0
    %599 = vmatpush.msra.mxu0 0.0
    %600 = vmatpush.msra.mxu0 0.0
    %601 = vmatpush.msra.mxu0 0.0
    %602 = vmatpush.msra.mxu0 0.0
    %603 = vmatpush.msra.mxu0 0.0
    %604 = vmatpush.msra.mxu0 0.0
    %605 = vmatpush.msra.mxu0 0.0
    %606 = vmatpush.msra.mxu0 0.0
    %607 = vmatpush.msra.mxu0 %v347
    %608 = vmatpush.msra.mxu0 %v346
    %609 = vmatmul.f32.gmra.mxu0 %v591
    %v610 = vpop.f32.mrf.mxu0
    %v611 = vadd.f32 0.0, %v610
    %612 = vdwg.mxu0
    %v613 = vmul.f32 %v611, 0.25
    %v614 = vmul.f32 %v613, %v613
    %v616 = vrot.slane %v614, 7
    %v618 = vsub.f32 %v613, %v616
    %v619 = vmax.f32 %v618, 0.0
    %v620 = vadd.f32 %v619, 1e-05
    %v621 = vrsqrt.pop %v620
    %v622 = vmul.f32 %v621, %v620
    %v623 = vmul.f32 %v622, %v621
    %v624 = vmul.f32 0.5, %v623
    %v625 = vsub.f32 1.5, %v624
    %v626 = vmul.f32 %v621, %v625
    %vm627 = vweird.f32 %v620
    %vm628 = vweird.f32 %v621
    %vm629 = vmor %vm627, %vm628
    %v630 = vsel %vm629, %v621, %v626
    %v632 = vrot.slane %v630, 1
    %v634 = vmul.f32 %v118, %v632
    %v635 = vmul.f32 %v613, %v634
    %v636 = vsub.f32 %v134, %v635
    %v637 = vperm.slane %v634, 0
    %v638 = vperm.slane %v636, 0
    %v639 = vsel %vm78, %v637, %v638
    %v641 = vsel %vm141, %v639, 0
    %643 = vmatpush.msra.mxu0 0.0
    %644 = vmatpush.msra.mxu0 0.0
    %645 = vmatpush.msra.mxu0 0.0
    %646 = vmatpush.msra.mxu0 0.0
    %647 = vmatpush.msra.mxu0 0.0
    %648 = vmatpush.msra.mxu0 0.0
    %649 = vmatpush.msra.mxu0 0.0
    %650 = vmatpush.msra.mxu0 0.0
    %651 = vmatpush.msra.mxu0 0.0
    %652 = vmatpush.msra.mxu0 0.0
    %653 = vmatpush.msra.mxu0 0.0
    %654 = vmatpush.msra.mxu0 0.0
    %655 = vmatpush.msra.mxu0 0.0
    %656 = vmatpush.msra.mxu0 0.0
    %657 = vmatpush.msra.mxu0 0.0
    %658 = vmatpush.msra.mxu0 %v399
    %659 = vmatmul.f32.gmra.mxu0 %v641
    %v660 = vpop.f32.mrf.mxu0
    %v661 = vadd.f32 0.0, %v660
    %662 = vdwg.mxu0
    %v663 = vperm.slane %v661, 0
    %v664 = vmul.f32 %v572, %v663
    %v665 = vperm.slane %v661, 1
    %v666 = vadd.f32 %v664, %v665
    %v667 = vmax.f32 %v666, 0.0
    %v668 = vadd.f32 %v667, %v427
    %v669 = vld [vmem:[#allocation2 + $0x160] sm:$0xff]
    %v670 = vld [vmem:[#allocation2 + $0x168] sm:$0xff]
    %v672 = vsel %vm348, %v668, 0
    %674 = vmatpush.msra.mxu0 0.0
    %675 = vmatpush.msra.mxu0 0.0
    %676 = vmatpush.msra.mxu0 0.0
    %677 = vmatpush.msra.mxu0 0.0
    %678 = vmatpush.msra.mxu0 0.0
    %679 = vmatpush.msra.mxu0 0.0
    %680 = vmatpush.msra.mxu0 0.0
    %681 = vmatpush.msra.mxu0 0.0
    %682 = vmatpush.msra.mxu0 0.0
    %683 = vmatpush.msra.mxu0 0.0
    %684 = vmatpush.msra.mxu0 0.0
    %685 = vmatpush.msra.mxu0 0.0
    %686 = vmatpush.msra.mxu0 0.0
    %687 = vmatpush.msra.mxu0 0.0
    %688 = vmatpush.msra.mxu0 %v670
    %689 = vmatpush.msra.mxu0 %v669
    %690 = vmatmul.f32.gmra.mxu0 %v672
    %v691 = vpop.f32.mrf.mxu0
    %v692 = vadd.f32 0.0, %v691
    %693 = vdwg.mxu0
    %v694 = vsel %vm201, %v692, 0.0
    %v695 = vrot.slane %v694, 4
    %v696 = vadd.f32 %v694, %v695
    %v697 = vrot.slane %v696, 2
    %v698 = vadd.f32 %v696, %v697
    %v699 = vrot.slane %v698, 1
    %v700 = vadd.f32 %v698, %v699
    %v701 = vmul.f32 %v692, %v692
    %v702 = vsel %vm201, %v701, 0.0
    %v703 = vrot.slane %v702, 4
    %v704 = vadd.f32 %v702, %v703
    %v705 = vrot.slane %v704, 2
    %v706 = vadd.f32 %v704, %v705
    %v707 = vrot.slane %v706, 1
    %v708 = vadd.f32 %v706, %v707
    %v709 = vsel %vm78, %v700, %v708
    %v711 = vsel %vm222, %v709, 0
    %713 = vmatpush.msra.mxu0 0.0
    %714 = vmatpush.msra.mxu0 0.0
    %715 = vmatpush.msra.mxu0 0.0
    %716 = vmatpush.msra.mxu0 0.0
    %717 = vmatpush.msra.mxu0 0.0
    %718 = vmatpush.msra.mxu0 0.0
    %719 = vmatpush.msra.mxu0 0.0
    %720 = vmatpush.msra.mxu0 0.0
    %721 = vmatpush.msra.mxu0 0.0
    %722 = vmatpush.msra.mxu0 0.0
    %723 = vmatpush.msra.mxu0 0.0
    %724 = vmatpush.msra.mxu0 0.0
    %725 = vmatpush.msra.mxu0 %v221
    %726 = vmatpush.msra.mxu0 %v220
    %727 = vmatpush.msra.mxu0 %v219
    %728 = vmatpush.msra.mxu0 %v218
    %729 = vmatmul.f32.gmra.mxu0 %v711
    %v730 = vpop.f32.mrf.mxu0
    %v731 = vadd.f32 0.0, %v730
    %732 = vdwg.mxu0
    %v733 = vmul.f32 %v731, 0.125
    %v734 = vmul.f32 %v733, %v733
    %v736 = vrot.slane %v734, 7
    %v738 = vsub.f32 %v733, %v736
    %v739 = vmax.f32 %v738, 0.0
    %v740 = vadd.f32 %v739, 1e-05
    %v741 = vrsqrt.pop %v740
    %v742 = vmul.f32 %v741, %v740
    %v743 = vmul.f32 %v742, %v741
    %v744 = vmul.f32 0.5, %v743
    %v745 = vsub.f32 1.5, %v744
    %v746 = vmul.f32 %v741, %v745
    %vm747 = vweird.f32 %v740
    %vm748 = vweird.f32 %v741
    %vm749 = vmor %vm747, %vm748
    %v750 = vsel %vm749, %v741, %v746
    %v752 = vrot.slane %v750, 1
    %v754 = vmul.f32 %v118, %v752
    %v755 = vmul.f32 %v733, %v754
    %v756 = vsub.f32 %v134, %v755
    %v757 = vperm.slane %v754, 0
    %v758 = vperm.slane %v756, 0
    %v759 = vsel %vm78, %v757, %v758
    %v761 = vsel %vm141, %v759, 0
    %763 = vmatpush.msra.mxu0 0.0
    %764 = vmatpush.msra.mxu0 0.0
    %765 = vmatpush.msra.mxu0 0.0
    %766 = vmatpush.msra.mxu0 0.0
    %767 = vmatpush.msra.mxu0 0.0
    %768 = vmatpush.msra.mxu0 0.0
    %769 = vmatpush.msra.mxu0 0.0
    %770 = vmatpush.msra.mxu0 0.0
    %771 = vmatpush.msra.mxu0 0.0
    %772 = vmatpush.msra.mxu0 0.0
    %773 = vmatpush.msra.mxu0 0.0
    %774 = vmatpush.msra.mxu0 0.0
    %775 = vmatpush.msra.mxu0 0.0
    %776 = vmatpush.msra.mxu0 0.0
    %777 = vmatpush.msra.mxu0 0.0
    %778 = vmatpush.msra.mxu0 %v273
    %779 = vmatmul.f32.gmra.mxu0 %v761
    %v780 = vpop.f32.mrf.mxu0
    %v781 = vadd.f32 0.0, %v780
    %782 = vdwg.mxu0
    %v783 = vperm.slane %v781, 0
    %v784 = vmul.f32 %v692, %v783
    %v785 = vperm.slane %v781, 1
    %v786 = vadd.f32 %v784, %v785
    %v787 = vmax.f32 %v786, 0.0
    %v788 = vadd.f32 %v787, %v301
    %v789 = vld [vmem:[#allocation2 + $0x170] sm:$0xff]
    %v790 = vld [vmem:[#allocation2 + $0x178] sm:$0xff]
    %v791 = vld [vmem:[#allocation2 + $0x180] sm:$0xff]
    %v792 = vld [vmem:[#allocation2 + $0x188] sm:$0xff]
    %v794 = vsel %vm222, %v788, 0
    %796 = vmatpush.msra.mxu0 0.0
    %797 = vmatpush.msra.mxu0 0.0
    %798 = vmatpush.msra.mxu0 0.0
    %799 = vmatpush.msra.mxu0 0.0
    %800 = vmatpush.msra.mxu0 0.0
    %801 = vmatpush.msra.mxu0 0.0
    %802 = vmatpush.msra.mxu0 0.0
    %803 = vmatpush.msra.mxu0 0.0
    %804 = vmatpush.msra.mxu0 0.0
    %805 = vmatpush.msra.mxu0 0.0
    %806 = vmatpush.msra.mxu0 0.0
    %807 = vmatpush.msra.mxu0 0.0
    %808 = vmatpush.msra.mxu0 %v792
    %809 = vmatpush.msra.mxu0 %v791
    %810 = vmatpush.msra.mxu0 %v790
    %811 = vmatpush.msra.mxu0 %v789
    %812 = vmatmul.f32.gmra.mxu0 %v794
    %v813 = vpop.f32.mrf.mxu0
    %v814 = vadd.f32 0.0, %v813
    %815 = vdwg.mxu0
    %v816 = vsel %vm60, %v814, 0.0
    %v817 = vrot.slane %v816, 4
    %v818 = vadd.f32 %v816, %v817
    %v819 = vrot.slane %v818, 2
    %v820 = vadd.f32 %v818, %v819
    %v821 = vrot.slane %v820, 1
    %v822 = vadd.f32 %v820, %v821
    %v823 = vmul.f32 %v814, %v814
    %v824 = vsel %vm60, %v823, 0.0
    %v825 = vrot.slane %v824, 4
    %v826 = vadd.f32 %v824, %v825
    %v827 = vrot.slane %v826, 2
    %v828 = vadd.f32 %v826, %v827
    %v829 = vrot.slane %v828, 1
    %v830 = vadd.f32 %v828, %v829
    %v831 = vsel %vm78, %v822, %v830
    %v833 = vsel %vm36, %v831, 0
    %835 = vmatpush.msra.mxu0 0.0
    %836 = vmatpush.msra.mxu0 0.0
    %837 = vmatpush.msra.mxu0 0.0
    %838 = vmatpush.msra.mxu0 0.0
    %839 = vmatpush.msra.mxu0 0.0
    %840 = vmatpush.msra.mxu0 0.0
    %841 = vmatpush.msra.mxu0 0.0
    %842 = vmatpush.msra.mxu0 0.0
    %843 = vmatpush.msra.mxu0 %v87
    %844 = vmatpush.msra.mxu0 %v86
    %845 = vmatpush.msra.mxu0 %v85
    %846 = vmatpush.msra.mxu0 %v84
    %847 = vmatpush.msra.mxu0 %v83
    %848 = vmatpush.msra.mxu0 %v82
    %849 = vmatpush.msra.mxu0 %v81
    %850 = vmatpush.msra.mxu0 %v80
    %851 = vmatmul.f32.gmra.mxu0 %v833
    %v852 = vpop.f32.mrf.mxu0
    %v853 = vadd.f32 0.0, %v852
    %854 = vdwg.mxu0
    %v855 = vmul.f32 %v853, 0.0625
    %v856 = vmul.f32 %v855, %v855
    %v858 = vrot.slane %v856, 7
    %v860 = vsub.f32 %v855, %v858
    %v861 = vmax.f32 %v860, 0.0
    %v862 = vadd.f32 %v861, 1e-05
    %v863 = vrsqrt.pop %v862
    %v864 = vmul.f32 %v863, %v862
    %v865 = vmul.f32 %v864, %v863
    %v866 = vmul.f32 0.5, %v865
    %v867 = vsub.f32 1.5, %v866
    %v868 = vmul.f32 %v863, %v867
    %vm869 = vweird.f32 %v862
    %vm870 = vweird.f32 %v863
    %vm871 = vmor %vm869, %vm870
    %v872 = vsel %vm871, %v863, %v868
    %v874 = vrot.slane %v872, 1
    %v876 = vmul.f32 %v118, %v874
    %v877 = vmul.f32 %v855, %v876
    %v878 = vsub.f32 %v134, %v877
    %v879 = vperm.slane %v876, 0
    %v880 = vperm.slane %v878, 0
    %v881 = vsel %vm78, %v879, %v880
    %v883 = vsel %vm141, %v881, 0
    %885 = vmatpush.msra.mxu0 0.0
    %886 = vmatpush.msra.mxu0 0.0
    %887 = vmatpush.msra.mxu0 0.0
    %888 = vmatpush.msra.mxu0 0.0
    %889 = vmatpush.msra.mxu0 0.0
    %890 = vmatpush.msra.mxu0 0.0
    %891 = vmatpush.msra.mxu0 0.0
    %892 = vmatpush.msra.mxu0 0.0
    %893 = vmatpush.msra.mxu0 0.0
    %894 = vmatpush.msra.mxu0 0.0
    %895 = vmatpush.msra.mxu0 0.0
    %896 = vmatpush.msra.mxu0 0.0
    %897 = vmatpush.msra.mxu0 0.0
    %898 = vmatpush.msra.mxu0 0.0
    %899 = vmatpush.msra.mxu0 0.0
    %900 = vmatpush.msra.mxu0 %v140
    %901 = vmatmul.f32.gmra.mxu0 %v883
    %v902 = vpop.f32.mrf.mxu0
    %v903 = vadd.f32 0.0, %v902
    %904 = vdwg.mxu0
    %v905 = vperm.slane %v903, 0
    %v906 = vmul.f32 %v814, %v905
    %v907 = vperm.slane %v903, 1
    %v908 = vadd.f32 %v906, %v907
    %v909 = vmax.f32 %v908, 0.0
    %v910 = vadd.f32 %v909, %v169
    %v911 = vld [vmem:[#allocation2 + $0x190] sm:$0xff]
    %v912 = vld [vmem:[#allocation2 + $0x198] sm:$0xff]
    %v913 = vld [vmem:[#allocation2 + $0x1a0] sm:$0xff]
    %v914 = vld [vmem:[#allocation2 + $0x1a8] sm:$0xff]
    %v915 = vld [vmem:[#allocation2 + $0x1b0] sm:$0xff]
    %v916 = vld [vmem:[#allocation2 + $0x1b8] sm:$0xff]
    %v917 = vld [vmem:[#allocation2 + $0x1c0] sm:$0xff]
    %v918 = vld [vmem:[#allocation2 + $0x1c8] sm:$0xff]
    %v920 = vsel %vm36, %v910, 0
    %922 = vmatpush.msra.mxu0 0.0
    %923 = vmatpush.msra.mxu0 0.0
    %924 = vmatpush.msra.mxu0 0.0
    %925 = vmatpush.msra.mxu0 0.0
    %926 = vmatpush.msra.mxu0 0.0
    %927 = vmatpush.msra.mxu0 0.0
    %928 = vmatpush.msra.mxu0 0.0
    %929 = vmatpush.msra.mxu0 0.0
    %930 = vmatpush.msra.mxu0 %v918
    %931 = vmatpush.msra.mxu0 %v917
    %932 = vmatpush.msra.mxu0 %v916
    %933 = vmatpush.msra.mxu0 %v915
    %934 = vmatpush.msra.mxu0 %v914
    %935 = vmatpush.msra.mxu0 %v913
    %936 = vmatpush.msra.mxu0 %v912
    %937 = vmatpush.msra.mxu0 %v911
    %938 = vmatmul.f32.gmra.mxu0 %v920
    %v939 = vpop.f32.mrf.mxu0
    %v940 = vadd.f32 0.0, %v939
    %941 = vdwg.mxu0
    %v942 = vsel %vm60, %v940, 0.0
    %v943 = vrot.slane %v942, 4
    %v944 = vadd.f32 %v942, %v943
    %v945 = vrot.slane %v944, 2
    %v946 = vadd.f32 %v944, %v945
    %v947 = vrot.slane %v946, 1
    %v948 = vadd.f32 %v946, %v947
    %v949 = vmul.f32 %v940, %v940
    %v950 = vsel %vm60, %v949, 0.0
    %v951 = vrot.slane %v950, 4
    %v952 = vadd.f32 %v950, %v951
    %v953 = vrot.slane %v952, 2
    %v954 = vadd.f32 %v952, %v953
    %v955 = vrot.slane %v954, 1
    %v956 = vadd.f32 %v954, %v955
    %v957 = vsel %vm78, %v948, %v956
    %v958 = vld [vmem:[#allocation2 + $0x1d0] sm:$0xff]
    %v959 = vld [vmem:[#allocation2 + $0x1d8] sm:$0xff]
    %v960 = vld [vmem:[#allocation2 + $0x1e0] sm:$0xff]
    %v961 = vld [vmem:[#allocation2 + $0x1e8] sm:$0xff]
    %v962 = vld [vmem:[#allocation2 + $0x1f0] sm:$0xff]
    %v963 = vld [vmem:[#allocation2 + $0x1f8] sm:$0xff]
    %v964 = vld [vmem:[#allocation2 + $0x200] sm:$0xff]
    %v965 = vld [vmem:[#allocation2 + $0x208] sm:$0xff]
    %v967 = vsel %vm36, %v957, 0
    %969 = vmatpush.msra.mxu0 0.0
    %970 = vmatpush.msra.mxu0 0.0
    %971 = vmatpush.msra.mxu0 0.0
    %972 = vmatpush.msra.mxu0 0.0
    %973 = vmatpush.msra.mxu0 0.0
    %974 = vmatpush.msra.mxu0 0.0
    %975 = vmatpush.msra.mxu0 0.0
    %976 = vmatpush.msra.mxu0 0.0
    %977 = vmatpush.msra.mxu0 %v965
    %978 = vmatpush.msra.mxu0 %v964
    %979 = vmatpush.msra.mxu0 %v963
    %980 = vmatpush.msra.mxu0 %v962
    %981 = vmatpush.msra.mxu0 %v961
    %982 = vmatpush.msra.mxu0 %v960
    %983 = vmatpush.msra.mxu0 %v959
    %984 = vmatpush.msra.mxu0 %v958
    %985 = vmatmul.f32.gmra.mxu0 %v967
    %v986 = vpop.f32.mrf.mxu0
    %v987 = vadd.f32 0.0, %v986
    %988 = vdwg.mxu0
    %v989 = vmul.f32 %v987, 0.03125
    %v990 = vmul.f32 %v989, %v989
    %v992 = vrot.slane %v990, 7
    %v994 = vsub.f32 %v989, %v992
    %v995 = vmax.f32 %v994, 0.0
    %v996 = vld [vmem:[#allocation2 + $0x218] sm:$0x1]
    %v997 = vadd.f32 %v995, 1e-05
    %v998 = vrsqrt.pop %v997
    %v999 = vmul.f32 %v998, %v997
    %v1000 = vmul.f32 %v999, %v998
    %v1001 = vmul.f32 0.5, %v1000
    %v1002 = vsub.f32 1.5, %v1001
    %v1003 = vmul.f32 %v998, %v1002
    %vm1004 = vweird.f32 %v997
    %vm1005 = vweird.f32 %v998
    %vm1006 = vmor %vm1004, %vm1005
    %v1007 = vsel %vm1006, %v998, %v1003
    %v1009 = vrot.slane %v1007, 1
    %v1011 = vmul.f32 %v996, %v1009
    %v1012 = vld [vmem:[#allocation2 + $0x220] sm:$0x1]
    %v1013 = vmul.f32 %v989, %v1011
    %v1014 = vsub.f32 %v1012, %v1013
    %v1015 = vperm.slane %v1011, 0
    %v1016 = vperm.slane %v1014, 0
    %v1017 = vsel %vm78, %v1015, %v1016
    %v1018 = vld [vmem:[#allocation2 + $0x210] sm:$0xf]
    %vm1019 = vcmask 31744
    %v1021 = vsel %vm1019, %v1017, 0
    %vm1023 = vcmask 1043456
    %v1025 = vsel %vm1023, %v1018, 0
    %1027 = vmatpush.msra.mxu0 0.0
    %1028 = vmatpush.msra.mxu0 0.0
    %1029 = vmatpush.msra.mxu0 0.0
    %1030 = vmatpush.msra.mxu0 0.0
    %1031 = vmatpush.msra.mxu0 0.0
    %1032 = vmatpush.msra.mxu0 0.0
    %1033 = vmatpush.msra.mxu0 0.0
    %1034 = vmatpush.msra.mxu0 0.0
    %1035 = vmatpush.msra.mxu0 0.0
    %1036 = vmatpush.msra.mxu0 0.0
    %1037 = vmatpush.msra.mxu0 0.0
    %1038 = vmatpush.msra.mxu0 0.0
    %1039 = vmatpush.msra.mxu0 0.0
    %1040 = vmatpush.msra.mxu0 0.0
    %1041 = vmatpush.msra.mxu0 0.0
    %1042 = vmatpush.msra.mxu0 %v1025
    %1043 = vmatmul.f32.gmra.mxu0 %v1021
    %v1044 = vpop.f32.mrf.mxu0
    %v1045 = vadd.f32 0.0, %v1044
    %1046 = vdwg.mxu0
    %v1047 = vperm.slane %v1045, 0
    %v1048 = vmul.f32 %v940, %v1047
    %v1049 = vperm.slane %v1045, 1
    %v1050 = vadd.f32 %v1048, %v1049
    %v1051 = vmax.f32 %v1050, 0.0
    %v1052 = vld [vmem:[#allocation2 + $0x228] sm:$0xff]
    %v1053 = vld [vmem:[#allocation2 + $0x230] sm:$0xff]
    %v1054 = vld [vmem:[#allocation2 + $0x238] sm:$0xff]
    %v1055 = vld [vmem:[#allocation2 + $0x240] sm:$0xff]
    %v1056 = vld [vmem:[#allocation2 + $0x248] sm:$0xff]
    %v1057 = vld [vmem:[#allocation2 + $0x250] sm:$0xff]
    %v1058 = vld [vmem:[#allocation2 + $0x258] sm:$0xff]
    %v1059 = vld [vmem:[#allocation2 + $0x260] sm:$0xff]
    %v1060 = vld [vmem:[#allocation2 + $0x268] sm:$0x1]
    %v1061 = vperm.slane %v1060, 0
    %v1063 = vsel %vm36, %v1051, 0
    %1065 = vmatpush.msra.mxu0 0.0
    %1066 = vmatpush.msra.mxu0 0.0
    %1067 = vmatpush.msra.mxu0 0.0
    %1068 = vmatpush.msra.mxu0 0.0
    %1069 = vmatpush.msra.mxu0 0.0
    %1070 = vmatpush.msra.mxu0 0.0
    %1071 = vmatpush.msra.mxu0 0.0
    %1072 = vmatpush.msra.mxu0 0.0
    %1073 = vmatpush.msra.mxu0 %v1059
    %1074 = vmatpush.msra.mxu0 %v1058
    %1075 = vmatpush.msra.mxu0 %v1057
    %1076 = vmatpush.msra.mxu0 %v1056
    %1077 = vmatpush.msra.mxu0 %v1055
    %1078 = vmatpush.msra.mxu0 %v1054
    %1079 = vmatpush.msra.mxu0 %v1053
    %1080 = vmatpush.msra.mxu0 %v1052
    %1081 = vmatmul.f32.gmra.mxu0 %v1063
    %v1082 = vpop.f32.mrf.mxu0
    %v1083 = vadd.f32 %v1061, %v1082
    %1084 = vdwg.mxu0
    %1085 = vst.msk [vmem:[%s2] sm:$0x3] %vm201, %v1083
    // Predicated region
    $region14: #{forward.1} parent=1 // pred_check
      _
    $region15: #{forward.1} parent=1 // pred_check_branch
      %1087 = sbr.rel (0) target = $region17
    $region16: #{forward.1} parent=1 // pred_region
      _
    $region17: #{forward.1} parent=1 // pred_fallthru
      _
    // Predicated region
    $region18: #{forward.1} parent=1 // pred_check
      _
    $region19: #{forward.1} parent=1 // pred_check_branch
      %1089 = sbr.rel (0) target = $region21
    $region20: #{forward.1} parent=1 // pred_region
      _
    $region21: #{forward.1} parent=1 // pred_fallthru
      _
    %1090 = vsyncpa [#allocation3], 1

</llo_original>
